<compile_context>
chip_gen: v6e
topology: v6e:2x2x1
jax: 0.10.0
libtpu: 0.0.40
codegen_flags: <defaults>
</compile_context>

<pallas_src>
import functools
import math

import numpy as np
import jax
import jax.numpy as jnp
from jax import lax
from jax.experimental import pallas as pl
from jax.experimental.pallas import tpu as pltpu


# ----------------------------- Pallas kernel -------------------------------


def _famca_kernel(left_ref, right_ref, down_ref, wwt_ref, w1_ref, w3_ref,
                  fc1_ref, fc2_ref, out_ref, pad_ref, col_ref, *,
                  C, Cin, W, HW, PADL, PADR, row_coeffs):
    """Fused FAMCA body for one batch element.

    left_ref / right_ref : (C, HW)        f32
    down_ref             : (Hd*Cin, Wd)   f32   rows ordered (y, c)
    wwt_ref              : (Wd, W)        f32   width bilinear matrix (transposed)
    w1_ref               : (C, Cin)       f32   1x1 conv weight
    w3_ref               : (C, 27C)       bf16  3x3 conv weight, im2col layout
    fc1_ref / fc2_ref    : (C//4, C) / (C, C//4) f32
    out_ref              : (C, HW)        f32
    pad_ref  (scratch)   : (3C, PADL+HW+PADR) bf16  zero-padded merge staging
    col_ref  (scratch)   : (27C, HW)      bf16  in-VMEM im2col columns
    """
    f32 = jnp.float32
    bf16 = jnp.bfloat16
    C3 = 3 * C

    # ---- zero pad columns (vertical boundary zeros of the 3x3 conv) ----
    # Done every grid step on purpose; see header note about megacore scratch.
    pad_ref[:, :PADL] = jnp.zeros((C3, PADL), bf16)
    pad_ref[:, PADL + HW:PADL + HW + PADR] = jnp.zeros((C3, PADR), bf16)

    # ---- stage left / right channel groups (lane-aligned, PADL % 128 == 0) ----
    pad_ref[0:C, PADL:PADL + HW] = left_ref[...].astype(bf16)
    pad_ref[2 * C:C3, PADL:PADL + HW] = right_ref[...].astype(bf16)

    # ---- down branch: bilinear upsample (separable, in-kernel) + 1x1 conv + ReLU
    # width interp: one small matmul, rows grouped as (source_row, channel)
    a = jnp.dot(down_ref[...], wwt_ref[...], preferred_element_type=f32)   # (Hd*Cin, W)
    # height interp: static 2-tap lerp per output row (align_corners=True)
    rows = []
    for (y0, y1, c0, c1) in row_coeffs:
        r = a[y0 * Cin:(y0 + 1) * Cin, :] * c0
        if c1 != 0.0:
            r = r + a[y1 * Cin:(y1 + 1) * Cin, :] * c1
        rows.append(r)                                                      # (Cin, W)
    up = jnp.concatenate(rows, axis=1)                                      # (Cin, HW)
    d = jnp.dot(w1_ref[...], up, preferred_element_type=f32)                # (C, HW)
    d = jnp.maximum(d, 0.0)
    pad_ref[C:2 * C, PADL:PADL + HW] = d.astype(bf16)

    # ---- 3x3 conv (padding=1) as ONE deep matmul via in-VMEM im2col ----
    # Horizontal wrap is masked on the INPUT side while building the copies;
    # vertical boundaries fall into the zeroed PADL/PADR regions.
    lane = lax.broadcasted_iota(jnp.int32, (1, HW), 1)
    colw = lane % W
    mask_l = colw >= 1               # dx = -1 valid
    mask_r = colw <= W - 2           # dx = +1 valid
    for ky in range(3):
        for kx in range(3):
            tap = ky * 3 + kx
            start = PADL + (ky - 1) * W + (kx - 1)
            blk = pad_ref[:, start:start + HW]                              # (3C, HW) bf16
            if kx == 0:
                blk = jnp.where(mask_l, blk, 0)
            elif kx == 2:
                blk = jnp.where(mask_r, blk, 0)
            col_ref[tap * C3:(tap + 1) * C3, :] = blk

    merge = jnp.dot(w3_ref[...], col_ref[...], preferred_element_type=f32)  # (C, HW)
    merge = jnp.maximum(merge, 0.0)

    # ---- SE: global avg pool -> FC -> ReLU -> FC -> sigmoid -> channel scale ----
    pooled = jnp.mean(merge, axis=1, keepdims=True)                          # (C, 1) exact
    h1 = jnp.maximum(
        jnp.dot(fc1_ref[...], pooled, preferred_element_type=f32), 0.0)
    y = jax.nn.sigmoid(
        jnp.dot(fc2_ref[...], h1, preferred_element_type=f32))               # (C, 1)
    out_ref[...] = (y * merge).astype(out_ref.dtype)


# ------------------------------- helpers ------------------------------------


def _interp_matrix(out_size, in_size):
    """1-D bilinear (align_corners=True) resampling matrix, shape (out, in)."""
    m = np.zeros((out_size, in_size), np.float32)
    if in_size == 1:
        m[:, 0] = 1.0
        return m
    for o in range(out_size):
        src = 0.0 if out_size == 1 else o * (in_size - 1) / (out_size - 1)
        i0 = min(max(int(math.floor(src)), 0), in_size - 2)
        frac = src - i0
        m[o, i0] += 1.0 - frac
        m[o, i0 + 1] += frac
    return m


def _height_coeffs(out_size, in_size):
    """Static (y0, y1, w0, w1) lerp coefficients per output row."""
    coeffs = []
    for o in range(out_size):
        if in_size == 1:
            coeffs.append((0, 0, 1.0, 0.0))
            continue
        src = 0.0 if out_size == 1 else o * (in_size - 1) / (out_size - 1)
        y0 = min(max(int(math.floor(src)), 0), in_size - 2)
        frac = src - y0
        coeffs.append((y0, y0 + 1, float(1.0 - frac), float(frac)))
    return tuple(coeffs)


# ------------------------------- JAX glue -----------------------------------


def famca_forward(left, down, right, params):
    w1, w3, fc1, fc2 = params["w1"], params["w3"], params["fc1"], params["fc2"]
    B, C, H, W = left.shape
    _, Cin, Hd, Wd = down.shape
    C4 = fc1.shape[0]
    HW = H * W
    # F.interpolate(down, size=H) makes a square (H, H) map; the cat only works
    # when the inputs are square, so require it.
    assert H == W, "FAMCA requires square spatial inputs (interpolate to size=H)."

    # lane-aligned zero pads around the flat (C, HW) staging region; must cover
    # tap offsets in [-(W+1), W+1].
    PADL = PADR = max(128, -(-(W + 1) // 128) * 128)

    # separable bilinear: width as a matmul operand, height as static coefficients
    wwt = jnp.asarray(_interp_matrix(W, Wd).T)                       # (Wd, W)
    row_coeffs = _height_coeffs(H, Hd)

    # down relaid out as (Hd, Cin, Wd) so each source row's channels are a
    # contiguous sublane block in-kernel (no in-kernel transposes needed).
    down_t = jnp.transpose(down, (0, 2, 1, 3)).reshape(B, Hd * Cin, Wd)

    left_flat = left.reshape(B, C, HW)
    right_flat = right.reshape(B, C, HW)

    # 3x3 conv weights regrouped for the single im2col matmul:
    # column index = (ky*3+kx)*3C + ci  <->  w3[o, ci, ky, kx]
    w3im = jnp.transpose(w3, (0, 2, 3, 1)).reshape(C, 27 * C).astype(jnp.bfloat16)

    kernel = functools.partial(
        _famca_kernel, C=C, Cin=Cin, W=W, HW=HW, PADL=PADL, PADR=PADR,
        row_coeffs=row_coeffs)

    flops = 2 * B * (HW * 27 * C * C + HW * Cin * C + Hd * Cin * Wd * W
                     + C4 * C + C * C4)
    bytes_accessed = int(
        (left_flat.size + right_flat.size + down_t.size + B * C * HW
         + wwt.size + w1.size + fc1.size + fc2.size) * 4 + w3im.size * 2)

    out_flat = pl.pallas_call(
        kernel,
        out_shape=jax.ShapeDtypeStruct((B, C, HW), jnp.float32),
        grid_spec=pltpu.PrefetchScalarGridSpec(
            num_scalar_prefetch=0,
            grid=(B,),
            in_specs=[
                pl.BlockSpec((None, C, HW), lambda b: (b, 0, 0)),          # left
                pl.BlockSpec((None, C, HW), lambda b: (b, 0, 0)),          # right
                pl.BlockSpec((None, Hd * Cin, Wd), lambda b: (b, 0, 0)),   # down (y,c,x)
                pl.BlockSpec((Wd, W), lambda b: (0, 0)),                   # width interp
                pl.BlockSpec((C, Cin), lambda b: (0, 0)),                  # 1x1 conv weight
                pl.BlockSpec((C, 27 * C), lambda b: (0, 0)),               # 3x3 conv (im2col)
                pl.BlockSpec((C4, C), lambda b: (0, 0)),                   # fc1
                pl.BlockSpec((C, C4), lambda b: (0, 0)),                   # fc2
            ],
            out_specs=pl.BlockSpec((None, C, HW), lambda b: (b, 0, 0)),
            scratch_shapes=[
                pltpu.VMEM((3 * C, PADL + HW + PADR), jnp.bfloat16),   # padded staging
                pltpu.VMEM((27 * C, HW), jnp.bfloat16),                # im2col columns
            ],
        ),
        compiler_params=pltpu.CompilerParams(
            dimension_semantics=("parallel",),
            # TODO(synk): re-derive for production tiles (especially v7x, 64 MiB VMEM).
            vmem_limit_bytes=32 * 1024 * 1024,
        ),
        cost_estimate=pl.CostEstimate(flops=flops, transcendentals=B * C,
                                      bytes_accessed=bytes_accessed),
    )(left_flat, right_flat, down_t, wwt, w1, w3im, fc1, fc2)

    return out_flat.reshape(B, C, H, W)


# --------------------------- pure-JAX reference ------------------------------


def famca_reference(left, down, right, params):
    w1, w3, fc1, fc2 = params["w1"], params["w3"], params["fc1"], params["fc2"]
    B, C, H, W = left.shape
    _, Cin, Hd, Wd = down.shape
    Wh = jnp.asarray(_interp_matrix(H, Hd))
    Ww = jnp.asarray(_interp_matrix(W, Wd))
    hi = lax.Precision.HIGHEST
    up = jnp.einsum('hy,bcyx,wx->bchw', Wh, down, Ww, precision=hi)
    d = jax.nn.relu(jnp.einsum('oc,bchw->bohw', w1, up, precision=hi))
    merge_in = jnp.concatenate([left, d, right], axis=1)
    merge = jax.nn.relu(lax.conv_general_dilated(
        merge_in, w3, (1, 1), ((1, 1), (1, 1)),
        dimension_numbers=('NCHW', 'OIHW', 'NCHW'), precision=hi))
    pooled = merge.mean(axis=(2, 3))
    h = jax.nn.relu(jnp.einsum('bc,oc->bo', pooled, fc1, precision=hi))
    y = jax.nn.sigmoid(jnp.einsum('bc,oc->bo', h, fc2, precision=hi))
    return y[:, :, None, None] * merge


# --------------------------------- main --------------------------------------


if __name__ == "__main__":
    B, Cin, Cout = 2, 4, 8
    H = W = 16
    Hd = Wd = 8

    key = jax.random.PRNGKey(0)
    k1, k2, k3, k4, k5, k6, k7 = jax.random.split(key, 7)

    left = jax.random.normal(k1, (B, Cout, H, W), jnp.float32)
    down = jax.random.normal(k2, (B, Cin, Hd, Wd), jnp.float32)
    right = jax.random.normal(k3, (B, Cout, H, W), jnp.float32)

    params = {
        "w1": jax.random.normal(k4, (Cout, Cin), jnp.float32) * 0.2,             # conv 1x1, no bias
        "w3": jax.random.normal(k5, (Cout, 3 * Cout, 3, 3), jnp.float32) * 0.1,  # conv 3x3, no bias
        "fc1": jax.random.normal(k6, (Cout // 4, Cout), jnp.float32) * 0.3,      # Linear, no bias
        "fc2": jax.random.normal(k7, (Cout, Cout // 4), jnp.float32) * 0.3,      # Linear, no bias
    }

    out = jax.jit(famca_forward)(left, down, right, params)
    out = jax.block_until_ready(out)

    ref = famca_reference(left, down, right, params)
    assert out.shape == (B, Cout, H, W)
    # bf16 MXU operands (f32 accumulation) for the 3x3 conv -> relaxed tolerance vs f32 ref.
    assert jnp.allclose(out, ref, rtol=4e-2, atol=4e-2), float(jnp.max(jnp.abs(out - ref)))

    print("KERNEL_OK")
</pallas_src>

<mosaic_0001>
module attributes {stable_mosaic.version = 11 : i64} {
  func.func @_famca_kernel(%arg0: i32, %arg1: memref<1x8x256xf32, #tpu.memory_space<vmem>>, %arg2: memref<1x8x256xf32, #tpu.memory_space<vmem>>, %arg3: memref<1x32x8xf32, #tpu.memory_space<vmem>>, %arg4: memref<8x16xf32, #tpu.memory_space<vmem>>, %arg5: memref<8x4xf32, #tpu.memory_space<vmem>>, %arg6: memref<8x216xbf16, #tpu.memory_space<vmem>>, %arg7: memref<2x8xf32, #tpu.memory_space<vmem>>, %arg8: memref<8x2xf32, #tpu.memory_space<vmem>>, %arg9: memref<1x8x256xf32, #tpu.memory_space<vmem>>, %arg10: memref<24x512xbf16, #tpu.memory_space<vmem>>, %arg11: memref<216x256xbf16, #tpu.memory_space<vmem>>) attributes {dimension_semantics = [#tpu.dimension_semantics<parallel>], iteration_bounds = array<i64: 2>, scalar_prefetch = 0 : i64, scratch_operands = 2 : i64, tpu.core_type = #tpu.core_type<tc>, window_params = [{transform_indices = @transform_0, window_bounds = array<i64: 1, 8, 256>}, {transform_indices = @transform_1, window_bounds = array<i64: 1, 8, 256>}, {transform_indices = @transform_2, window_bounds = array<i64: 1, 32, 8>}, {pipeline_mode = #tpu.pipeline_mode<synchronous>, transform_indices = @transform_3, window_bounds = array<i64: 8, 16>}, {pipeline_mode = #tpu.pipeline_mode<synchronous>, transform_indices = @transform_4, window_bounds = array<i64: 8, 4>}, {pipeline_mode = #tpu.pipeline_mode<synchronous>, transform_indices = @transform_5, window_bounds = array<i64: 8, 216>}, {pipeline_mode = #tpu.pipeline_mode<synchronous>, transform_indices = @transform_6, window_bounds = array<i64: 2, 8>}, {pipeline_mode = #tpu.pipeline_mode<synchronous>, transform_indices = @transform_7, window_bounds = array<i64: 8, 2>}, {transform_indices = @transform_8, window_bounds = array<i64: 1, 8, 256>}]} {
    %cst = arith.constant 0.000000e+00 : bf16
    %0 = vector.broadcast %cst : bf16 to vector<24x128xbf16>
    %c0 = arith.constant 0 : index
    %c0_0 = arith.constant 0 : index
    %1 = vector.load %arg10[%c0, %c0_0] : memref<24x512xbf16, #tpu.memory_space<vmem>>, vector<24x128xbf16>
    tpu.vector_store %arg10[%c0, %c0_0], %0 {strides = array<i32>} : memref<24x512xbf16, #tpu.memory_space<vmem>>, vector<24x128xbf16>,
    %cst_1 = arith.constant 0.000000e+00 : bf16
    %2 = vector.broadcast %cst_1 : bf16 to vector<24x128xbf16>
    %c0_2 = arith.constant 0 : index
    %c384 = arith.constant 384 : index
    %3 = vector.load %arg10[%c0_2, %c384] : memref<24x512xbf16, #tpu.memory_space<vmem>>, vector<24x128xbf16>
    tpu.vector_store %arg10[%c0_2, %c384], %2 {strides = array<i32>} : memref<24x512xbf16, #tpu.memory_space<vmem>>, vector<24x128xbf16>,
    %c0_3 = arith.constant 0 : index
    %c0_4 = arith.constant 0 : index
    %c0_5 = arith.constant 0 : index
    %4 = vector.load %arg1[%c0_3, %c0_4, %c0_5] : memref<1x8x256xf32, #tpu.memory_space<vmem>>, vector<1x8x256xf32>
    %5 = vector.shape_cast %4 : vector<1x8x256xf32> to vector<8x256xf32>
    %6 = arith.truncf %5 : vector<8x256xf32> to vector<8x256xbf16>
    %c0_6 = arith.constant 0 : index
    %c128 = arith.constant 128 : index
    %7 = vector.load %arg10[%c0_6, %c128] : memref<24x512xbf16, #tpu.memory_space<vmem>>, vector<8x256xbf16>
    tpu.vector_store %arg10[%c0_6, %c128], %6 {strides = array<i32>} : memref<24x512xbf16, #tpu.memory_space<vmem>>, vector<8x256xbf16>,
    %c0_7 = arith.constant 0 : index
    %c0_8 = arith.constant 0 : index
    %c0_9 = arith.constant 0 : index
    %8 = vector.load %arg2[%c0_7, %c0_8, %c0_9] : memref<1x8x256xf32, #tpu.memory_space<vmem>>, vector<1x8x256xf32>
    %9 = vector.shape_cast %8 : vector<1x8x256xf32> to vector<8x256xf32>
    %10 = arith.truncf %9 : vector<8x256xf32> to vector<8x256xbf16>
    %c16 = arith.constant 16 : index
    %c128_10 = arith.constant 128 : index
    %11 = vector.load %arg10[%c16, %c128_10] : memref<24x512xbf16, #tpu.memory_space<vmem>>, vector<8x256xbf16>
    tpu.vector_store %arg10[%c16, %c128_10], %10 {strides = array<i32>} : memref<24x512xbf16, #tpu.memory_space<vmem>>, vector<8x256xbf16>,
    %c0_11 = arith.constant 0 : index
    %c0_12 = arith.constant 0 : index
    %c0_13 = arith.constant 0 : index
    %12 = vector.load %arg3[%c0_11, %c0_12, %c0_13] : memref<1x32x8xf32, #tpu.memory_space<vmem>>, vector<1x32x8xf32>
    %13 = vector.shape_cast %12 : vector<1x32x8xf32> to vector<32x8xf32>
    %c0_14 = arith.constant 0 : index
    %c0_15 = arith.constant 0 : index
    %14 = vector.load %arg4[%c0_14, %c0_15] : memref<8x16xf32, #tpu.memory_space<vmem>>, vector<8x16xf32>
    %cst_16 = arith.constant dense<0.000000e+00> : vector<32x16xf32>
    %15 = tpu.matmul %13, %14, %cst_16 {dimension_numbers = #tpu.dot_dimension_numbers<[1], [0], [0], [1], [0, 0, 1, 1], [], []>} : vector<32x8xf32>, vector<8x16xf32>, vector<32x16xf32> -> vector<32x16xf32>
    %16 = vector.extract_strided_slice %15 {offsets = [0, 0], sizes = [4, 16], strides = [1, 1]} : vector<32x16xf32> to vector<4x16xf32>
    %cst_17 = arith.constant 1.000000e+00 : f32
    %17 = vector.broadcast %cst_17 : f32 to vector<4x16xf32>
    %18 = arith.mulf %16, %17 : vector<4x16xf32>
    %19 = vector.extract_strided_slice %15 {offsets = [0, 0], sizes = [4, 16], strides = [1, 1]} : vector<32x16xf32> to vector<4x16xf32>
    %cst_18 = arith.constant 0.533333361 : f32
    %20 = vector.broadcast %cst_18 : f32 to vector<4x16xf32>
    %21 = arith.mulf %19, %20 : vector<4x16xf32>
    %22 = vector.extract_strided_slice %15 {offsets = [4, 0], sizes = [4, 16], strides = [1, 1]} : vector<32x16xf32> to vector<4x16xf32>
    %cst_19 = arith.constant 0.466666669 : f32
    %23 = vector.broadcast %cst_19 : f32 to vector<4x16xf32>
    %24 = arith.mulf %22, %23 : vector<4x16xf32>
    %25 = arith.addf %21, %24 : vector<4x16xf32>
    %26 = vector.extract_strided_slice %15 {offsets = [0, 0], sizes = [4, 16], strides = [1, 1]} : vector<32x16xf32> to vector<4x16xf32>
    %cst_20 = arith.constant 0.0666666701 : f32
    %27 = vector.broadcast %cst_20 : f32 to vector<4x16xf32>
    %28 = arith.mulf %26, %27 : vector<4x16xf32>
    %29 = vector.extract_strided_slice %15 {offsets = [4, 0], sizes = [4, 16], strides = [1, 1]} : vector<32x16xf32> to vector<4x16xf32>
    %cst_21 = arith.constant 0.933333337 : f32
    %30 = vector.broadcast %cst_21 : f32 to vector<4x16xf32>
    %31 = arith.mulf %29, %30 : vector<4x16xf32>
    %32 = arith.addf %28, %31 : vector<4x16xf32>
    %33 = vector.extract_strided_slice %15 {offsets = [4, 0], sizes = [4, 16], strides = [1, 1]} : vector<32x16xf32> to vector<4x16xf32>
    %cst_22 = arith.constant 6.000000e-01 : f32
    %34 = vector.broadcast %cst_22 : f32 to vector<4x16xf32>
    %35 = arith.mulf %33, %34 : vector<4x16xf32>
    %36 = vector.extract_strided_slice %15 {offsets = [8, 0], sizes = [4, 16], strides = [1, 1]} : vector<32x16xf32> to vector<4x16xf32>
    %cst_23 = arith.constant 4.000000e-01 : f32
    %37 = vector.broadcast %cst_23 : f32 to vector<4x16xf32>
    %38 = arith.mulf %36, %37 : vector<4x16xf32>
    %39 = arith.addf %35, %38 : vector<4x16xf32>
    %40 = vector.extract_strided_slice %15 {offsets = [4, 0], sizes = [4, 16], strides = [1, 1]} : vector<32x16xf32> to vector<4x16xf32>
    %cst_24 = arith.constant 0.13333334 : f32
    %41 = vector.broadcast %cst_24 : f32 to vector<4x16xf32>
    %42 = arith.mulf %40, %41 : vector<4x16xf32>
    %43 = vector.extract_strided_slice %15 {offsets = [8, 0], sizes = [4, 16], strides = [1, 1]} : vector<32x16xf32> to vector<4x16xf32>
    %cst_25 = arith.constant 0.866666674 : f32
    %44 = vector.broadcast %cst_25 : f32 to vector<4x16xf32>
    %45 = arith.mulf %43, %44 : vector<4x16xf32>
    %46 = arith.addf %42, %45 : vector<4x16xf32>
    %47 = vector.extract_strided_slice %15 {offsets = [8, 0], sizes = [4, 16], strides = [1, 1]} : vector<32x16xf32> to vector<4x16xf32>
    %cst_26 = arith.constant 0.666666686 : f32
    %48 = vector.broadcast %cst_26 : f32 to vector<4x16xf32>
    %49 = arith.mulf %47, %48 : vector<4x16xf32>
    %50 = vector.extract_strided_slice %15 {offsets = [12, 0], sizes = [4, 16], strides = [1, 1]} : vector<32x16xf32> to vector<4x16xf32>
    %cst_27 = arith.constant 0.333333343 : f32
    %51 = vector.broadcast %cst_27 : f32 to vector<4x16xf32>
    %52 = arith.mulf %50, %51 : vector<4x16xf32>
    %53 = arith.addf %49, %52 : vector<4x16xf32>
    %54 = vector.extract_strided_slice %15 {offsets = [8, 0], sizes = [4, 16], strides = [1, 1]} : vector<32x16xf32> to vector<4x16xf32>
    %cst_28 = arith.constant 2.000000e-01 : f32
    %55 = vector.broadcast %cst_28 : f32 to vector<4x16xf32>
    %56 = arith.mulf %54, %55 : vector<4x16xf32>
    %57 = vector.extract_strided_slice %15 {offsets = [12, 0], sizes = [4, 16], strides = [1, 1]} : vector<32x16xf32> to vector<4x16xf32>
    %cst_29 = arith.constant 8.000000e-01 : f32
    %58 = vector.broadcast %cst_29 : f32 to vector<4x16xf32>
    %59 = arith.mulf %57, %58 : vector<4x16xf32>
    %60 = arith.addf %56, %59 : vector<4x16xf32>
    %61 = vector.extract_strided_slice %15 {offsets = [12, 0], sizes = [4, 16], strides = [1, 1]} : vector<32x16xf32> to vector<4x16xf32>
    %cst_30 = arith.constant 0.733333349 : f32
    %62 = vector.broadcast %cst_30 : f32 to vector<4x16xf32>
    %63 = arith.mulf %61, %62 : vector<4x16xf32>
    %64 = vector.extract_strided_slice %15 {offsets = [16, 0], sizes = [4, 16], strides = [1, 1]} : vector<32x16xf32> to vector<4x16xf32>
    %cst_31 = arith.constant 0.266666681 : f32
    %65 = vector.broadcast %cst_31 : f32 to vector<4x16xf32>
    %66 = arith.mulf %64, %65 : vector<4x16xf32>
    %67 = arith.addf %63, %66 : vector<4x16xf32>
    %68 = vector.extract_strided_slice %15 {offsets = [12, 0], sizes = [4, 16], strides = [1, 1]} : vector<32x16xf32> to vector<4x16xf32>
    %cst_32 = arith.constant 0.266666681 : f32
    %69 = vector.broadcast %cst_32 : f32 to vector<4x16xf32>
    %70 = arith.mulf %68, %69 : vector<4x16xf32>
    %71 = vector.extract_strided_slice %15 {offsets = [16, 0], sizes = [4, 16], strides = [1, 1]} : vector<32x16xf32> to vector<4x16xf32>
    %cst_33 = arith.constant 0.733333349 : f32
    %72 = vector.broadcast %cst_33 : f32 to vector<4x16xf32>
    %73 = arith.mulf %71, %72 : vector<4x16xf32>
    %74 = arith.addf %70, %73 : vector<4x16xf32>
    %75 = vector.extract_strided_slice %15 {offsets = [16, 0], sizes = [4, 16], strides = [1, 1]} : vector<32x16xf32> to vector<4x16xf32>
    %cst_34 = arith.constant 8.000000e-01 : f32
    %76 = vector.broadcast %cst_34 : f32 to vector<4x16xf32>
    %77 = arith.mulf %75, %76 : vector<4x16xf32>
    %78 = vector.extract_strided_slice %15 {offsets = [20, 0], sizes = [4, 16], strides = [1, 1]} : vector<32x16xf32> to vector<4x16xf32>
    %cst_35 = arith.constant 2.000000e-01 : f32
    %79 = vector.broadcast %cst_35 : f32 to vector<4x16xf32>
    %80 = arith.mulf %78, %79 : vector<4x16xf32>
    %81 = arith.addf %77, %80 : vector<4x16xf32>
    %82 = vector.extract_strided_slice %15 {offsets = [16, 0], sizes = [4, 16], strides = [1, 1]} : vector<32x16xf32> to vector<4x16xf32>
    %cst_36 = arith.constant 0.333333343 : f32
    %83 = vector.broadcast %cst_36 : f32 to vector<4x16xf32>
    %84 = arith.mulf %82, %83 : vector<4x16xf32>
    %85 = vector.extract_strided_slice %15 {offsets = [20, 0], sizes = [4, 16], strides = [1, 1]} : vector<32x16xf32> to vector<4x16xf32>
    %cst_37 = arith.constant 0.666666686 : f32
    %86 = vector.broadcast %cst_37 : f32 to vector<4x16xf32>
    %87 = arith.mulf %85, %86 : vector<4x16xf32>
    %88 = arith.addf %84, %87 : vector<4x16xf32>
    %89 = vector.extract_strided_slice %15 {offsets = [20, 0], sizes = [4, 16], strides = [1, 1]} : vector<32x16xf32> to vector<4x16xf32>
    %cst_38 = arith.constant 0.866666674 : f32
    %90 = vector.broadcast %cst_38 : f32 to vector<4x16xf32>
    %91 = arith.mulf %89, %90 : vector<4x16xf32>
    %92 = vector.extract_strided_slice %15 {offsets = [24, 0], sizes = [4, 16], strides = [1, 1]} : vector<32x16xf32> to vector<4x16xf32>
    %cst_39 = arith.constant 0.13333334 : f32
    %93 = vector.broadcast %cst_39 : f32 to vector<4x16xf32>
    %94 = arith.mulf %92, %93 : vector<4x16xf32>
    %95 = arith.addf %91, %94 : vector<4x16xf32>
    %96 = vector.extract_strided_slice %15 {offsets = [20, 0], sizes = [4, 16], strides = [1, 1]} : vector<32x16xf32> to vector<4x16xf32>
    %cst_40 = arith.constant 4.000000e-01 : f32
    %97 = vector.broadcast %cst_40 : f32 to vector<4x16xf32>
    %98 = arith.mulf %96, %97 : vector<4x16xf32>
    %99 = vector.extract_strided_slice %15 {offsets = [24, 0], sizes = [4, 16], strides = [1, 1]} : vector<32x16xf32> to vector<4x16xf32>
    %cst_41 = arith.constant 6.000000e-01 : f32
    %100 = vector.broadcast %cst_41 : f32 to vector<4x16xf32>
    %101 = arith.mulf %99, %100 : vector<4x16xf32>
    %102 = arith.addf %98, %101 : vector<4x16xf32>
    %103 = vector.extract_strided_slice %15 {offsets = [24, 0], sizes = [4, 16], strides = [1, 1]} : vector<32x16xf32> to vector<4x16xf32>
    %cst_42 = arith.constant 0.933333337 : f32
    %104 = vector.broadcast %cst_42 : f32 to vector<4x16xf32>
    %105 = arith.mulf %103, %104 : vector<4x16xf32>
    %106 = vector.extract_strided_slice %15 {offsets = [28, 0], sizes = [4, 16], strides = [1, 1]} : vector<32x16xf32> to vector<4x16xf32>
    %cst_43 = arith.constant 0.0666666701 : f32
    %107 = vector.broadcast %cst_43 : f32 to vector<4x16xf32>
    %108 = arith.mulf %106, %107 : vector<4x16xf32>
    %109 = arith.addf %105, %108 : vector<4x16xf32>
    %110 = vector.extract_strided_slice %15 {offsets = [24, 0], sizes = [4, 16], strides = [1, 1]} : vector<32x16xf32> to vector<4x16xf32>
    %cst_44 = arith.constant 0.466666669 : f32
    %111 = vector.broadcast %cst_44 : f32 to vector<4x16xf32>
    %112 = arith.mulf %110, %111 : vector<4x16xf32>
    %113 = vector.extract_strided_slice %15 {offsets = [28, 0], sizes = [4, 16], strides = [1, 1]} : vector<32x16xf32> to vector<4x16xf32>
    %cst_45 = arith.constant 0.533333361 : f32
    %114 = vector.broadcast %cst_45 : f32 to vector<4x16xf32>
    %115 = arith.mulf %113, %114 : vector<4x16xf32>
    %116 = arith.addf %112, %115 : vector<4x16xf32>
    %117 = vector.extract_strided_slice %15 {offsets = [24, 0], sizes = [4, 16], strides = [1, 1]} : vector<32x16xf32> to vector<4x16xf32>
    %cst_46 = arith.constant 0.000000e+00 : f32
    %118 = vector.broadcast %cst_46 : f32 to vector<4x16xf32>
    %119 = arith.mulf %117, %118 : vector<4x16xf32>
    %120 = vector.extract_strided_slice %15 {offsets = [28, 0], sizes = [4, 16], strides = [1, 1]} : vector<32x16xf32> to vector<4x16xf32>
    %cst_47 = arith.constant 1.000000e+00 : f32
    %121 = vector.broadcast %cst_47 : f32 to vector<4x16xf32>
    %122 = arith.mulf %120, %121 : vector<4x16xf32>
    %123 = arith.addf %119, %122 : vector<4x16xf32>
    %124 = tpu.concatenate %18, %25, %32, %39, %46, %53, %60, %67, %74, %81, %88, %95, %102, %109, %116, %123 in 1 : vector<4x16xf32>, vector<4x16xf32>, vector<4x16xf32>, vector<4x16xf32>, vector<4x16xf32>, vector<4x16xf32>, vector<4x16xf32>, vector<4x16xf32>, vector<4x16xf32>, vector<4x16xf32>, vector<4x16xf32>, vector<4x16xf32>, vector<4x16xf32>, vector<4x16xf32>, vector<4x16xf32>, vector<4x16xf32> -> vector<4x256xf32>
    %c0_48 = arith.constant 0 : index
    %c0_49 = arith.constant 0 : index
    %125 = vector.load %arg5[%c0_48, %c0_49] : memref<8x4xf32, #tpu.memory_space<vmem>>, vector<8x4xf32>
    %cst_50 = arith.constant dense<0.000000e+00> : vector<8x256xf32>
    %126 = tpu.matmul %125, %124, %cst_50 {dimension_numbers = #tpu.dot_dimension_numbers<[1], [0], [0], [1], [0, 0, 1, 1], [], []>} : vector<8x4xf32>, vector<4x256xf32>, vector<8x256xf32> -> vector<8x256xf32>
    %cst_51 = arith.constant 0.000000e+00 : f32
    %127 = vector.broadcast %cst_51 : f32 to vector<8x256xf32>
    %128 = arith.maximumf %126, %127 : vector<8x256xf32>
    %129 = arith.truncf %128 : vector<8x256xf32> to vector<8x256xbf16>
    %c8 = arith.constant 8 : index
    %c128_52 = arith.constant 128 : index
    %130 = vector.load %arg10[%c8, %c128_52] : memref<24x512xbf16, #tpu.memory_space<vmem>>, vector<8x256xbf16>
    tpu.vector_store %arg10[%c8, %c128_52], %129 {strides = array<i32>} : memref<24x512xbf16, #tpu.memory_space<vmem>>, vector<8x256xbf16>,
    %131 = tpu.iota {dimensions = array<i32: 1>} : vector<1x256xi32>
    %c16_i32 = arith.constant 16 : i32
    %c0_i32 = arith.constant 0 : i32
    %132 = arith.cmpi eq, %c16_i32, %c0_i32 : i32
    %c1_i32 = arith.constant 1 : i32
    %133 = arith.select %132, %c1_i32, %c16_i32 : i32
    %134 = vector.broadcast %133 : i32 to vector<1x256xi32>
    %135 = arith.remsi %131, %134 : vector<1x256xi32>
    %c0_i32_53 = arith.constant 0 : i32
    %136 = vector.broadcast %c0_i32_53 : i32 to vector<1x256xi32>
    %137 = arith.cmpi ne, %135, %136 : vector<1x256xi32>
    %c0_i32_54 = arith.constant 0 : i32
    %138 = vector.broadcast %c0_i32_54 : i32 to vector<1x256xi32>
    %139 = arith.cmpi slt, %135, %138 : vector<1x256xi32>
    %c0_i32_55 = arith.constant 0 : i32
    %140 = arith.cmpi slt, %133, %c0_i32_55 : i32
    %141 = vector.broadcast %140 : i1 to vector<1x256xi1>
    %142 = vector.broadcast %141 : vector<1x256xi1> to vector<1x256xi1>
    %143 = arith.xori %139, %142 : vector<1x256xi1>
    %144 = arith.andi %143, %137 : vector<1x256xi1>
    %145 = vector.broadcast %133 : i32 to vector<1x256xi32>
    %146 = arith.addi %135, %145 : vector<1x256xi32>
    %147 = arith.select %144, %146, %135 : vector<1x256xi1>, vector<1x256xi32>
    %c1_i32_56 = arith.constant 1 : i32
    %148 = vector.broadcast %c1_i32_56 : i32 to vector<1x256xi32>
    %149 = arith.cmpi sge, %147, %148 : vector<1x256xi32>
    %c14_i32 = arith.constant 14 : i32
    %150 = vector.broadcast %c14_i32 : i32 to vector<1x256xi32>
    %151 = arith.cmpi sle, %147, %150 : vector<1x256xi32>
    %c0_57 = arith.constant 0 : index
    %c111 = arith.constant 111 : index
    %152 = vector.load %arg10[%c0_57, %c111] : memref<24x512xbf16, #tpu.memory_space<vmem>>, vector<24x256xbf16>
    %c0_i32_58 = arith.constant 0 : i32
    %153 = arith.sitofp %c0_i32_58 : i32 to bf16
    %154 = vector.shape_cast %149 : vector<1x256xi1> to vector<1x256xi1>
    %155 = vector.broadcast %154 : vector<1x256xi1> to vector<24x256xi1>
    %156 = vector.broadcast %153 : bf16 to vector<24x256xbf16>
    %157 = arith.select %155, %152, %156 : vector<24x256xi1>, vector<24x256xbf16>
    %c0_59 = arith.constant 0 : index
    %c0_60 = arith.constant 0 : index
    %158 = vector.load %arg11[%c0_59, %c0_60] : memref<216x256xbf16, #tpu.memory_space<vmem>>, vector<24x256xbf16>
    tpu.vector_store %arg11[%c0_59, %c0_60], %157 {strides = array<i32>} : memref<216x256xbf16, #tpu.memory_space<vmem>>, vector<24x256xbf16>,
    %c0_61 = arith.constant 0 : index
    %c112 = arith.constant 112 : index
    %159 = vector.load %arg10[%c0_61, %c112] : memref<24x512xbf16, #tpu.memory_space<vmem>>, vector<24x256xbf16>
    %c24 = arith.constant 24 : index
    %c0_62 = arith.constant 0 : index
    %160 = vector.load %arg11[%c24, %c0_62] : memref<216x256xbf16, #tpu.memory_space<vmem>>, vector<24x256xbf16>
    tpu.vector_store %arg11[%c24, %c0_62], %159 {strides = array<i32>} : memref<216x256xbf16, #tpu.memory_space<vmem>>, vector<24x256xbf16>,
    %c0_63 = arith.constant 0 : index
    %c113 = arith.constant 113 : index
    %161 = vector.load %arg10[%c0_63, %c113] : memref<24x512xbf16, #tpu.memory_space<vmem>>, vector<24x256xbf16>
    %c0_i32_64 = arith.constant 0 : i32
    %162 = arith.sitofp %c0_i32_64 : i32 to bf16
    %163 = vector.shape_cast %151 : vector<1x256xi1> to vector<1x256xi1>
    %164 = vector.broadcast %163 : vector<1x256xi1> to vector<24x256xi1>
    %165 = vector.broadcast %162 : bf16 to vector<24x256xbf16>
    %166 = arith.select %164, %161, %165 : vector<24x256xi1>, vector<24x256xbf16>
    %c48 = arith.constant 48 : index
    %c0_65 = arith.constant 0 : index
    %167 = vector.load %arg11[%c48, %c0_65] : memref<216x256xbf16, #tpu.memory_space<vmem>>, vector<24x256xbf16>
    tpu.vector_store %arg11[%c48, %c0_65], %166 {strides = array<i32>} : memref<216x256xbf16, #tpu.memory_space<vmem>>, vector<24x256xbf16>,
    %c0_66 = arith.constant 0 : index
    %c127 = arith.constant 127 : index
    %168 = vector.load %arg10[%c0_66, %c127] : memref<24x512xbf16, #tpu.memory_space<vmem>>, vector<24x256xbf16>
    %c0_i32_67 = arith.constant 0 : i32
    %169 = arith.sitofp %c0_i32_67 : i32 to bf16
    %170 = vector.shape_cast %149 : vector<1x256xi1> to vector<1x256xi1>
    %171 = vector.broadcast %170 : vector<1x256xi1> to vector<24x256xi1>
    %172 = vector.broadcast %169 : bf16 to vector<24x256xbf16>
    %173 = arith.select %171, %168, %172 : vector<24x256xi1>, vector<24x256xbf16>
    %c72 = arith.constant 72 : index
    %c0_68 = arith.constant 0 : index
    %174 = vector.load %arg11[%c72, %c0_68] : memref<216x256xbf16, #tpu.memory_space<vmem>>, vector<24x256xbf16>
    tpu.vector_store %arg11[%c72, %c0_68], %173 {strides = array<i32>} : memref<216x256xbf16, #tpu.memory_space<vmem>>, vector<24x256xbf16>,
    %c0_69 = arith.constant 0 : index
    %c128_70 = arith.constant 128 : index
    %175 = vector.load %arg10[%c0_69, %c128_70] : memref<24x512xbf16, #tpu.memory_space<vmem>>, vector<24x256xbf16>
    %c96 = arith.constant 96 : index
    %c0_71 = arith.constant 0 : index
    %176 = vector.load %arg11[%c96, %c0_71] : memref<216x256xbf16, #tpu.memory_space<vmem>>, vector<24x256xbf16>
    tpu.vector_store %arg11[%c96, %c0_71], %175 {strides = array<i32>} : memref<216x256xbf16, #tpu.memory_space<vmem>>, vector<24x256xbf16>,
    %c0_72 = arith.constant 0 : index
    %c129 = arith.constant 129 : index
    %177 = vector.load %arg10[%c0_72, %c129] : memref<24x512xbf16, #tpu.memory_space<vmem>>, vector<24x256xbf16>
    %c0_i32_73 = arith.constant 0 : i32
    %178 = arith.sitofp %c0_i32_73 : i32 to bf16
    %179 = vector.shape_cast %151 : vector<1x256xi1> to vector<1x256xi1>
    %180 = vector.broadcast %179 : vector<1x256xi1> to vector<24x256xi1>
    %181 = vector.broadcast %178 : bf16 to vector<24x256xbf16>
    %182 = arith.select %180, %177, %181 : vector<24x256xi1>, vector<24x256xbf16>
    %c120 = arith.constant 120 : index
    %c0_74 = arith.constant 0 : index
    %183 = vector.load %arg11[%c120, %c0_74] : memref<216x256xbf16, #tpu.memory_space<vmem>>, vector<24x256xbf16>
    tpu.vector_store %arg11[%c120, %c0_74], %182 {strides = array<i32>} : memref<216x256xbf16, #tpu.memory_space<vmem>>, vector<24x256xbf16>,
    %c0_75 = arith.constant 0 : index
    %c143 = arith.constant 143 : index
    %184 = vector.load %arg10[%c0_75, %c143] : memref<24x512xbf16, #tpu.memory_space<vmem>>, vector<24x256xbf16>
    %c0_i32_76 = arith.constant 0 : i32
    %185 = arith.sitofp %c0_i32_76 : i32 to bf16
    %186 = vector.shape_cast %149 : vector<1x256xi1> to vector<1x256xi1>
    %187 = vector.broadcast %186 : vector<1x256xi1> to vector<24x256xi1>
    %188 = vector.broadcast %185 : bf16 to vector<24x256xbf16>
    %189 = arith.select %187, %184, %188 : vector<24x256xi1>, vector<24x256xbf16>
    %c144 = arith.constant 144 : index
    %c0_77 = arith.constant 0 : index
    %190 = vector.load %arg11[%c144, %c0_77] : memref<216x256xbf16, #tpu.memory_space<vmem>>, vector<24x256xbf16>
    tpu.vector_store %arg11[%c144, %c0_77], %189 {strides = array<i32>} : memref<216x256xbf16, #tpu.memory_space<vmem>>, vector<24x256xbf16>,
    %c0_78 = arith.constant 0 : index
    %c144_79 = arith.constant 144 : index
    %191 = vector.load %arg10[%c0_78, %c144_79] : memref<24x512xbf16, #tpu.memory_space<vmem>>, vector<24x256xbf16>
    %c168 = arith.constant 168 : index
    %c0_80 = arith.constant 0 : index
    %192 = vector.load %arg11[%c168, %c0_80] : memref<216x256xbf16, #tpu.memory_space<vmem>>, vector<24x256xbf16>
    tpu.vector_store %arg11[%c168, %c0_80], %191 {strides = array<i32>} : memref<216x256xbf16, #tpu.memory_space<vmem>>, vector<24x256xbf16>,
    %c0_81 = arith.constant 0 : index
    %c145 = arith.constant 145 : index
    %193 = vector.load %arg10[%c0_81, %c145] : memref<24x512xbf16, #tpu.memory_space<vmem>>, vector<24x256xbf16>
    %c0_i32_82 = arith.constant 0 : i32
    %194 = arith.sitofp %c0_i32_82 : i32 to bf16
    %195 = vector.shape_cast %151 : vector<1x256xi1> to vector<1x256xi1>
    %196 = vector.broadcast %195 : vector<1x256xi1> to vector<24x256xi1>
    %197 = vector.broadcast %194 : bf16 to vector<24x256xbf16>
    %198 = arith.select %196, %193, %197 : vector<24x256xi1>, vector<24x256xbf16>
    %c192 = arith.constant 192 : index
    %c0_83 = arith.constant 0 : index
    %199 = vector.load %arg11[%c192, %c0_83] : memref<216x256xbf16, #tpu.memory_space<vmem>>, vector<24x256xbf16>
    tpu.vector_store %arg11[%c192, %c0_83], %198 {strides = array<i32>} : memref<216x256xbf16, #tpu.memory_space<vmem>>, vector<24x256xbf16>,
    %c0_84 = arith.constant 0 : index
    %c0_85 = arith.constant 0 : index
    %200 = vector.load %arg6[%c0_84, %c0_85] : memref<8x216xbf16, #tpu.memory_space<vmem>>, vector<8x216xbf16>
    %c0_86 = arith.constant 0 : index
    %c0_87 = arith.constant 0 : index
    %201 = vector.load %arg11[%c0_86, %c0_87] : memref<216x256xbf16, #tpu.memory_space<vmem>>, vector<216x256xbf16>
    %cst_88 = arith.constant dense<0.000000e+00> : vector<8x256xf32>
    %202 = tpu.matmul %200, %201, %cst_88 {dimension_numbers = #tpu.dot_dimension_numbers<[1], [0], [0], [1], [0, 0, 1, 1], [], []>} : vector<8x216xbf16>, vector<216x256xbf16>, vector<8x256xf32> -> vector<8x256xf32>
    %cst_89 = arith.constant 0.000000e+00 : f32
    %203 = vector.broadcast %cst_89 : f32 to vector<8x256xf32>
    %204 = arith.maximumf %202, %203 : vector<8x256xf32>
    %cst_90 = arith.constant dense<0.000000e+00> : vector<8xf32>
    %205 = vector.multi_reduction <add>, %204, %cst_90 [1] : vector<8x256xf32> to vector<8xf32>
    %206 = vector.shape_cast %205 : vector<8xf32> to vector<8x1xf32>
    %cst_91 = arith.constant 2.560000e+02 : f32
    %207 = vector.broadcast %cst_91 : f32 to vector<8x1xf32>
    %208 = arith.divf %206, %207 : vector<8x1xf32>
    %c0_92 = arith.constant 0 : index
    %c0_93 = arith.constant 0 : index
    %209 = vector.load %arg7[%c0_92, %c0_93] : memref<2x8xf32, #tpu.memory_space<vmem>>, vector<2x8xf32>
    %cst_94 = arith.constant dense<0.000000e+00> : vector<2x1xf32>
    %210 = tpu.matmul %209, %208, %cst_94 {dimension_numbers = #tpu.dot_dimension_numbers<[1], [0], [0], [1], [0, 0, 1, 1], [], []>} : vector<2x8xf32>, vector<8x1xf32>, vector<2x1xf32> -> vector<2x1xf32>
    %cst_95 = arith.constant 0.000000e+00 : f32
    %211 = vector.broadcast %cst_95 : f32 to vector<2x1xf32>
    %212 = arith.maximumf %210, %211 : vector<2x1xf32>
    %c0_96 = arith.constant 0 : index
    %c0_97 = arith.constant 0 : index
    %213 = vector.load %arg8[%c0_96, %c0_97] : memref<8x2xf32, #tpu.memory_space<vmem>>, vector<8x2xf32>
    %cst_98 = arith.constant dense<0.000000e+00> : vector<8x1xf32>
    %214 = tpu.matmul %213, %212, %cst_98 {dimension_numbers = #tpu.dot_dimension_numbers<[1], [0], [0], [1], [0, 0, 1, 1], [], []>} : vector<8x2xf32>, vector<2x1xf32>, vector<8x1xf32> -> vector<8x1xf32>
    %215 = arith.negf %214 : vector<8x1xf32>
    %216 = math.exp %215 : vector<8x1xf32>
    %cst_99 = arith.constant 1.000000e+00 : f32
    %217 = vector.broadcast %cst_99 : f32 to vector<8x1xf32>
    %218 = arith.addf %217, %216 : vector<8x1xf32>
    %219 = arith.divf %217, %218 : vector<8x1xf32>
    %220 = vector.broadcast %219 : vector<8x1xf32> to vector<8x256xf32>
    %221 = arith.mulf %220, %204 : vector<8x256xf32>
    %c0_100 = arith.constant 0 : index
    %c0_101 = arith.constant 0 : index
    %c0_102 = arith.constant 0 : index
    %222 = vector.load %arg9[%c0_100, %c0_101, %c0_102] : memref<1x8x256xf32, #tpu.memory_space<vmem>>, vector<1x8x256xf32>
    %223 = vector.shape_cast %222 : vector<1x8x256xf32> to vector<8x256xf32>
    %224 = vector.shape_cast %221 : vector<8x256xf32> to vector<1x8x256xf32>
    tpu.vector_store %arg9[%c0_100, %c0_101, %c0_102], %224 {strides = array<i32>} : memref<1x8x256xf32, #tpu.memory_space<vmem>>, vector<1x8x256xf32>,
    return
  }
  func.func @transform_0(%arg0: i32) -> (i32, i32, i32) {
    %c0_i32 = arith.constant 0 : i32
    %c0_i32_0 = arith.constant 0 : i32
    %c0_i32_1 = arith.constant 0 : i32
    return %arg0, %c0_i32, %c0_i32_0 : i32, i32, i32
  }
  func.func @transform_1(%arg0: i32) -> (i32, i32, i32) {
    %c0_i32 = arith.constant 0 : i32
    %c0_i32_0 = arith.constant 0 : i32
    %c0_i32_1 = arith.constant 0 : i32
    return %arg0, %c0_i32, %c0_i32_0 : i32, i32, i32
  }
  func.func @transform_2(%arg0: i32) -> (i32, i32, i32) {
    %c0_i32 = arith.constant 0 : i32
    %c0_i32_0 = arith.constant 0 : i32
    %c0_i32_1 = arith.constant 0 : i32
    return %arg0, %c0_i32, %c0_i32_0 : i32, i32, i32
  }
  func.func @transform_3(%arg0: i32) -> (i32, i32) {
    %c0_i32 = arith.constant 0 : i32
    %c0_i32_0 = arith.constant 0 : i32
    %c0_i32_1 = arith.constant 0 : i32
    return %c0_i32, %c0_i32_0 : i32, i32
  }
  func.func @transform_4(%arg0: i32) -> (i32, i32) {
    %c0_i32 = arith.constant 0 : i32
    %c0_i32_0 = arith.constant 0 : i32
    %c0_i32_1 = arith.constant 0 : i32
    return %c0_i32, %c0_i32_0 : i32, i32
  }
  func.func @transform_5(%arg0: i32) -> (i32, i32) {
    %c0_i32 = arith.constant 0 : i32
    %c0_i32_0 = arith.constant 0 : i32
    %c0_i32_1 = arith.constant 0 : i32
    return %c0_i32, %c0_i32_0 : i32, i32
  }
  func.func @transform_6(%arg0: i32) -> (i32, i32) {
    %c0_i32 = arith.constant 0 : i32
    %c0_i32_0 = arith.constant 0 : i32
    %c0_i32_1 = arith.constant 0 : i32
    return %c0_i32, %c0_i32_0 : i32, i32
  }
  func.func @transform_7(%arg0: i32) -> (i32, i32) {
    %c0_i32 = arith.constant 0 : i32
    %c0_i32_0 = arith.constant 0 : i32
    %c0_i32_1 = arith.constant 0 : i32
    return %c0_i32, %c0_i32_0 : i32, i32
  }
  func.func @transform_8(%arg0: i32) -> (i32, i32, i32) {
    %c0_i32 = arith.constant 0 : i32
    %c0_i32_0 = arith.constant 0 : i32
    %c0_i32_1 = arith.constant 0 : i32
    return %arg0, %c0_i32, %c0_i32_0 : i32, i32, i32
  }
}

</mosaic_0001>

<llo_original>
// kernel: famca_forward.1
$region0: #{famca_forward.1}
  #allocation0 [shape = 'u32[]', space=smem, size = 0x4, offset = 0x4, fixed_abs, tag = 'smem constant byte address 0x4 - core index']
  #allocation1 [shape = 'u32[144,128]{1,0:T(1,128)}', space=vmem, size = 0x12000, scoped, tag = 'internal scratch']
  #allocation2 [shape = 'bf16[24,512]{1,0:T(8,128)(2,1)}', space=vmem, size = 0x6000, scoped, tag = 'scratch operand']
  #allocation3 [shape = 'bf16[216,256]{1,0:T(8,128)(2,1)}', space=vmem, size = 0x1b000, scoped, tag = 'scratch operand']
  %s0 = inlined_call_operand.vmem [shape: f32[2,8,256], index: 0, kind: input, shape index: {}]
  %s1 = inlined_call_operand.vmem [shape: f32[2,8,256], index: 1, kind: input, shape index: {}]
  %s2 = inlined_call_operand.vmem [shape: f32[2,32,8], index: 2, kind: input, shape index: {}]
  %s3 = inlined_call_operand.vmem [shape: f32[8,16], index: 3, kind: input, shape index: {}]
  %s4 = inlined_call_operand.vmem [shape: f32[8,4], index: 4, kind: input, shape index: {}]
  %s5 = inlined_call_operand.vmem [shape: bf16[8,216], index: 5, kind: input, shape index: {}]
  %s6 = inlined_call_operand.vmem [shape: f32[2,8], index: 6, kind: input, shape index: {}]
  %s7 = inlined_call_operand.vmem [shape: f32[8,2], index: 7, kind: input, shape index: {}]
  %s8 = inlined_call_operand.vmem [shape: f32[2,8,256], index: 8, kind: output, shape index: {}]
  %s9 = sld [smem:[#allocation0]]
  $region65: #{famca_forward.1} parent=0
    _
  %s11 = ssub.s32 1, %s9
  %s12 = scalar_select 0, %s11, %s9
  loop: start=0, step=1, limit=4
  $region2: #{famca_forward.1} parent=0 // loop_pre_header
    _
  $region3: #{famca_forward.1} parent=0 // loop_header
    %s14 = sphi 0, %s18
    %p15 = scmp.ge.s32.totalorder %s14, 4
    %s24 = sphi 0, %s26
    %s27 = sphi 0, %s24
    %s28 = sphi 0, %s27
    %s44 = sphi 0, %s28
    %s50 = sphi 0, %s52
    %s53 = sphi 0, %s50
    %s54 = sphi 0, %s53
    %s70 = sphi 0, %s54
    %s76 = sphi 0, %s78
    %s79 = sphi 0, %s76
    %s80 = sphi 0, %s79
    %s96 = sphi 0, %s80
    %s100 = sphi 0, %s100
    %s102 = sphi 0, %s100
    %s103 = sphi 0, %s102
    %s117 = sphi 0, %s103
    %s121 = sphi 0, %s121
    %s123 = sphi 0, %s121
    %s124 = sphi 0, %s123
    %s138 = sphi 0, %s124
    %s142 = sphi 0, %s142
    %s144 = sphi 0, %s142
    %s145 = sphi 0, %s144
    %s159 = sphi 0, %s145
    %s163 = sphi 0, %s163
    %s165 = sphi 0, %s163
    %s166 = sphi 0, %s165
    %s180 = sphi 0, %s166
    %s184 = sphi 0, %s184
    %s186 = sphi 0, %s184
    %s187 = sphi 0, %s186
    %s201 = sphi 0, %s187
    %s207 = sphi 0, %s209
    %s210 = sphi 0, %s207
    %s211 = sphi 0, %s210
    %s227 = sphi 0, %s211
  $region4: #{famca_forward.1} parent=0 // loop_header_branch
    %17 = sbr.rel (%p15) target = $region8
  $region5: #{famca_forward.1} parent=0 // loop_body
    %s19 = ssub.s32 %s14, 1
    %s20 = ssub.s32 %s14, 2
    %s21 = sadd.s32 %s14, 1
    %s22 = ssub.s32 %s14, %s21
    %p23 = scmp.eq.s32.totalorder %s22, 0
    %s25 = sadd.s32 %s24, 1
    %s26 = scalar_select %p23, %s24, %s25
    %p29 = pneg %p23
    %p30 = scmp.eq.s32.totalorder %s14, 1
    %p31 = por %p29, %p30
    %p32 = scmp.ne.s32.totalorder %s24, %s27
    %p33 = scmp.eq.s32.totalorder %s14, 0
    %p34 = por %p32, %p33
    %p35 = scmp.ne.s32.totalorder %s24, %s27
    %p36 = scmp.eq.s32.totalorder %s19, 1
    %p37 = por %p35, %p36
    %p38 = scmp.ne.s32.totalorder %s27, %s28
    %p39 = scmp.eq.s32.totalorder %s19, 0
    %p40 = por %p38, %p39
    %p41 = scmp.ne.s32.totalorder %s27, %s28
    %p42 = scmp.eq.s32.totalorder %s20, 1
    %p43 = por %p41, %p42
    %p45 = scmp.ne.s32.totalorder %s28, %s44
    %p46 = scmp.eq.s32.totalorder %s20, 0
    %p47 = por %p45, %p46
    %s48 = ssub.s32 %s14, %s21
    %p49 = scmp.eq.s32.totalorder %s48, 0
    %s51 = sadd.s32 %s50, 1
    %s52 = scalar_select %p49, %s50, %s51
    %p55 = pneg %p49
    %p56 = scmp.eq.s32.totalorder %s14, 1
    %p57 = por %p55, %p56
    %p58 = scmp.ne.s32.totalorder %s50, %s53
    %p59 = scmp.eq.s32.totalorder %s14, 0
    %p60 = por %p58, %p59
    %p61 = scmp.ne.s32.totalorder %s50, %s53
    %p62 = scmp.eq.s32.totalorder %s19, 1
    %p63 = por %p61, %p62
    %p64 = scmp.ne.s32.totalorder %s53, %s54
    %p65 = scmp.eq.s32.totalorder %s19, 0
    %p66 = por %p64, %p65
    %p67 = scmp.ne.s32.totalorder %s53, %s54
    %p68 = scmp.eq.s32.totalorder %s20, 1
    %p69 = por %p67, %p68
    %p71 = scmp.ne.s32.totalorder %s54, %s70
    %p72 = scmp.eq.s32.totalorder %s20, 0
    %p73 = por %p71, %p72
    %s74 = ssub.s32 %s14, %s21
    %p75 = scmp.eq.s32.totalorder %s74, 0
    %s77 = sadd.s32 %s76, 1
    %s78 = scalar_select %p75, %s76, %s77
    %p81 = pneg %p75
    %p82 = scmp.eq.s32.totalorder %s14, 1
    %p83 = por %p81, %p82
    %p84 = scmp.ne.s32.totalorder %s76, %s79
    %p85 = scmp.eq.s32.totalorder %s14, 0
    %p86 = por %p84, %p85
    %p87 = scmp.ne.s32.totalorder %s76, %s79
    %p88 = scmp.eq.s32.totalorder %s19, 1
    %p89 = por %p87, %p88
    %p90 = scmp.ne.s32.totalorder %s79, %s80
    %p91 = scmp.eq.s32.totalorder %s19, 0
    %p92 = por %p90, %p91
    %p93 = scmp.ne.s32.totalorder %s79, %s80
    %p94 = scmp.eq.s32.totalorder %s20, 1
    %p95 = por %p93, %p94
    %p97 = scmp.ne.s32.totalorder %s80, %s96
    %p98 = scmp.eq.s32.totalorder %s20, 0
    %p99 = por %p97, %p98
    %s101 = sadd.s32 %s100, 1
    %p104 = scmp.eq.s32.totalorder %s14, 1
    %p105 = scmp.ne.s32.totalorder %s100, %s102
    %p106 = scmp.eq.s32.totalorder %s14, 0
    %p107 = por %p105, %p106
    %p108 = scmp.ne.s32.totalorder %s100, %s102
    %p109 = scmp.eq.s32.totalorder %s19, 1
    %p110 = por %p108, %p109
    %p111 = scmp.ne.s32.totalorder %s102, %s103
    %p112 = scmp.eq.s32.totalorder %s19, 0
    %p113 = por %p111, %p112
    %p114 = scmp.ne.s32.totalorder %s102, %s103
    %p115 = scmp.eq.s32.totalorder %s20, 1
    %p116 = por %p114, %p115
    %p118 = scmp.ne.s32.totalorder %s103, %s117
    %p119 = scmp.eq.s32.totalorder %s20, 0
    %p120 = por %p118, %p119
    %s122 = sadd.s32 %s121, 1
    %p125 = scmp.eq.s32.totalorder %s14, 1
    %p126 = scmp.ne.s32.totalorder %s121, %s123
    %p127 = scmp.eq.s32.totalorder %s14, 0
    %p128 = por %p126, %p127
    %p129 = scmp.ne.s32.totalorder %s121, %s123
    %p130 = scmp.eq.s32.totalorder %s19, 1
    %p131 = por %p129, %p130
    %p132 = scmp.ne.s32.totalorder %s123, %s124
    %p133 = scmp.eq.s32.totalorder %s19, 0
    %p134 = por %p132, %p133
    %p135 = scmp.ne.s32.totalorder %s123, %s124
    %p136 = scmp.eq.s32.totalorder %s20, 1
    %p137 = por %p135, %p136
    %p139 = scmp.ne.s32.totalorder %s124, %s138
    %p140 = scmp.eq.s32.totalorder %s20, 0
    %p141 = por %p139, %p140
    %s143 = sadd.s32 %s142, 1
    %p146 = scmp.eq.s32.totalorder %s14, 1
    %p147 = scmp.ne.s32.totalorder %s142, %s144
    %p148 = scmp.eq.s32.totalorder %s14, 0
    %p149 = por %p147, %p148
    %p150 = scmp.ne.s32.totalorder %s142, %s144
    %p151 = scmp.eq.s32.totalorder %s19, 1
    %p152 = por %p150, %p151
    %p153 = scmp.ne.s32.totalorder %s144, %s145
    %p154 = scmp.eq.s32.totalorder %s19, 0
    %p155 = por %p153, %p154
    %p156 = scmp.ne.s32.totalorder %s144, %s145
    %p157 = scmp.eq.s32.totalorder %s20, 1
    %p158 = por %p156, %p157
    %p160 = scmp.ne.s32.totalorder %s145, %s159
    %p161 = scmp.eq.s32.totalorder %s20, 0
    %p162 = por %p160, %p161
    %s164 = sadd.s32 %s163, 1
    %p167 = scmp.eq.s32.totalorder %s14, 1
    %p168 = scmp.ne.s32.totalorder %s163, %s165
    %p169 = scmp.eq.s32.totalorder %s14, 0
    %p170 = por %p168, %p169
    %p171 = scmp.ne.s32.totalorder %s163, %s165
    %p172 = scmp.eq.s32.totalorder %s19, 1
    %p173 = por %p171, %p172
    %p174 = scmp.ne.s32.totalorder %s165, %s166
    %p175 = scmp.eq.s32.totalorder %s19, 0
    %p176 = por %p174, %p175
    %p177 = scmp.ne.s32.totalorder %s165, %s166
    %p178 = scmp.eq.s32.totalorder %s20, 1
    %p179 = por %p177, %p178
    %p181 = scmp.ne.s32.totalorder %s166, %s180
    %p182 = scmp.eq.s32.totalorder %s20, 0
    %p183 = por %p181, %p182
    %s185 = sadd.s32 %s184, 1
    %p188 = scmp.eq.s32.totalorder %s14, 1
    %p189 = scmp.ne.s32.totalorder %s184, %s186
    %p190 = scmp.eq.s32.totalorder %s14, 0
    %p191 = por %p189, %p190
    %p192 = scmp.ne.s32.totalorder %s184, %s186
    %p193 = scmp.eq.s32.totalorder %s19, 1
    %p194 = por %p192, %p193
    %p195 = scmp.ne.s32.totalorder %s186, %s187
    %p196 = scmp.eq.s32.totalorder %s19, 0
    %p197 = por %p195, %p196
    %p198 = scmp.ne.s32.totalorder %s186, %s187
    %p199 = scmp.eq.s32.totalorder %s20, 1
    %p200 = por %p198, %p199
    %p202 = scmp.ne.s32.totalorder %s187, %s201
    %p203 = scmp.eq.s32.totalorder %s20, 0
    %p204 = por %p202, %p203
    %s205 = ssub.s32 %s14, %s21
    %p206 = scmp.eq.s32.totalorder %s205, 0
    %s208 = sadd.s32 %s207, 1
    %s209 = scalar_select %p206, %s207, %s208
    %p212 = pneg %p206
    %p213 = scmp.eq.s32.totalorder %s14, 1
    %p214 = por %p212, %p213
    %p215 = scmp.ne.s32.totalorder %s207, %s210
    %p216 = scmp.eq.s32.totalorder %s14, 0
    %p217 = por %p215, %p216
    %p218 = scmp.ne.s32.totalorder %s207, %s210
    %p219 = scmp.eq.s32.totalorder %s19, 1
    %p220 = por %p218, %p219
    %p221 = scmp.ne.s32.totalorder %s210, %s211
    %p222 = scmp.eq.s32.totalorder %s19, 0
    %p223 = por %p221, %p222
    %p224 = scmp.ne.s32.totalorder %s210, %s211
    %p225 = scmp.eq.s32.totalorder %s20, 1
    %p226 = por %p224, %p225
    %p228 = scmp.ne.s32.totalorder %s211, %s227
    %p229 = scmp.eq.s32.totalorder %s20, 0
    %p230 = por %p228, %p229
    %p231 = scmp.le.s32.totalorder 1, %s14
    %p232 = scmp.lt.s32.totalorder %s14, 3
    %p233 = pnand %p231, %p232
    %p234 = pneg %p233
    // Predicated region
    $region9: #{famca_forward.1} parent=5 // pred_check
      _
    $region10: #{famca_forward.1} parent=5 // pred_check_branch
      %236 = sbr.rel (%p233) target = $region12
    $region11: #{famca_forward.1} parent=5 // pred_region
      %s237 = ssub.s32 %s14, 1
      // Predicated region
      $region13: #{famca_forward.1} parent=11 // pred_check
        %p238 = pneg %p113
      $region14: #{famca_forward.1} parent=11 // pred_check_branch
        %240 = sbr.rel (%p238) target = $region16
      $region15: #{famca_forward.1} parent=11 // pred_region
        _
      $region16: #{famca_forward.1} parent=11 // pred_fallthru
        _
      // Predicated region
      $region17: #{famca_forward.1} parent=11 // pred_check
        %p241 = pneg %p134
      $region18: #{famca_forward.1} parent=11 // pred_check_branch
        %243 = sbr.rel (%p241) target = $region20
      $region19: #{famca_forward.1} parent=11 // pred_region
        _
      $region20: #{famca_forward.1} parent=11 // pred_fallthru
        _
      // Predicated region
      $region21: #{famca_forward.1} parent=11 // pred_check
        %p244 = pneg %p155
      $region22: #{famca_forward.1} parent=11 // pred_check_branch
        %246 = sbr.rel (%p244) target = $region24
      $region23: #{famca_forward.1} parent=11 // pred_region
        _
      $region24: #{famca_forward.1} parent=11 // pred_fallthru
        _
      // Predicated region
      $region25: #{famca_forward.1} parent=11 // pred_check
        %p247 = pneg %p176
      $region26: #{famca_forward.1} parent=11 // pred_check_branch
        %249 = sbr.rel (%p247) target = $region28
      $region27: #{famca_forward.1} parent=11 // pred_region
        _
      $region28: #{famca_forward.1} parent=11 // pred_fallthru
        _
      // Predicated region
      $region29: #{famca_forward.1} parent=11 // pred_check
        %p250 = pneg %p197
      $region30: #{famca_forward.1} parent=11 // pred_check_branch
        %252 = sbr.rel (%p250) target = $region32
      $region31: #{famca_forward.1} parent=11 // pred_region
        _
      $region32: #{famca_forward.1} parent=11 // pred_fallthru
        _
    $region12: #{famca_forward.1} parent=5 // pred_fallthru
      _
    %p253 = scmp.lt.s32.totalorder %s14, 2
    // Predicated region
    $region33: #{famca_forward.1} parent=5 // pred_check
      %p254 = pneg %p253
    $region34: #{famca_forward.1} parent=5 // pred_check_branch
      %256 = sbr.rel (%p254) target = $region36
    $region35: #{famca_forward.1} parent=5 // pred_region
      // Predicated region
      $region37: #{famca_forward.1} parent=35 // pred_check
        %p257 = pneg %p34
      $region38: #{famca_forward.1} parent=35 // pred_check_branch
        %259 = sbr.rel (%p257) target = $region40
      $region39: #{famca_forward.1} parent=35 // pred_region
        %p260 = scmp.lt.s32.totalorder %s14, 1
        %s261 = scalar_select %p260, %s14, 1
        %s262 = smul.addr %s261, 2
        %s263 = smul.addr %s262, 8
        %s264 = scalar_lea.vmem %s0, %s263
      $region40: #{famca_forward.1} parent=35 // pred_fallthru
        _
      // Predicated region
      $region41: #{famca_forward.1} parent=35 // pred_check
        %p265 = pneg %p60
      $region42: #{famca_forward.1} parent=35 // pred_check_branch
        %267 = sbr.rel (%p265) target = $region44
      $region43: #{famca_forward.1} parent=35 // pred_region
        %p268 = scmp.lt.s32.totalorder %s14, 1
        %s269 = scalar_select %p268, %s14, 1
        %s270 = smul.addr %s269, 2
        %s271 = smul.addr %s270, 8
        %s272 = scalar_lea.vmem %s1, %s271
      $region44: #{famca_forward.1} parent=35 // pred_fallthru
        _
      // Predicated region
      $region45: #{famca_forward.1} parent=35 // pred_check
        %p273 = pneg %p86
      $region46: #{famca_forward.1} parent=35 // pred_check_branch
        %275 = sbr.rel (%p273) target = $region48
      $region47: #{famca_forward.1} parent=35 // pred_region
        %p276 = scmp.lt.s32.totalorder %s14, 1
        %s277 = scalar_select %p276, %s14, 1
        %s278 = smul.addr %s277, 4
        %s279 = smul.addr %s278, 8
        %s280 = scalar_lea.vmem %s2, %s279
      $region48: #{famca_forward.1} parent=35 // pred_fallthru
        _
    $region36: #{famca_forward.1} parent=5 // pred_fallthru
      _
    %p281 = scmp.le.s32.totalorder 1, %s14
    %p282 = scmp.lt.s32.totalorder %s14, 3
    %p283 = pnand %p281, %p282
    %p284 = pneg %p283
    // Predicated region
    $region49: #{famca_forward.1} parent=5 // pred_check
      _
    $region50: #{famca_forward.1} parent=5 // pred_check_branch
      %286 = sbr.rel (%p283) target = $region52
    $region51: #{famca_forward.1} parent=5 // pred_region
      %s287 = ssub.s32 %s14, 1
      %p288 = scmp.lt.s32.totalorder %s19, 1
      %s289 = scalar_select %p288, %s19, 1
      %s290 = smul.addr %s289, 2
      %s291 = smul.addr %s290, 8
      %s292 = scalar_lea.vmem %s0, %s291
      %p293 = pneg %p40
      %p294 = pneg %p37
      %p295 = scmp.lt.s32.totalorder %s19, 1
      %s296 = scalar_select %p295, %s19, 1
      %s297 = smul.addr %s296, 2
      %s298 = smul.addr %s297, 8
      %s299 = scalar_lea.vmem %s1, %s298
      %p300 = pneg %p66
      %p301 = pneg %p63
      %p302 = scmp.lt.s32.totalorder %s19, 1
      %s303 = scalar_select %p302, %s19, 1
      %s304 = smul.addr %s303, 4
      %s305 = smul.addr %s304, 8
      %s306 = scalar_lea.vmem %s2, %s305
      %p307 = pneg %p92
      %p308 = pneg %p89
      %p309 = pneg %p113
      %p310 = pneg %p110
      %p311 = pneg %p134
      %p312 = pneg %p131
      %p313 = pneg %p155
      %p314 = pneg %p152
      %p315 = pneg %p176
      %p316 = pneg %p173
      %p317 = pneg %p197
      %p318 = pneg %p194
      %p319 = pneg %p223
      %p320 = pneg %p220
      %p321 = scmp.lt.s32.totalorder %s19, 1
      %s322 = scalar_select %p321, %s19, 1
      %s323 = smul.addr %s322, 2
      %s324 = smul.addr %s323, 8
      %s325 = scalar_lea.vmem %s8, %s324
      %p326 = scmp.lt.s32.totalorder %s19, 1
      %s327 = scalar_select %p326, %s19, 1
      %s328 = smul.addr %s327, 2
      %s329 = smul.addr %s328, 8
      %s330 = scalar_lea.vmem %s0, %s329
      %p331 = scmp.lt.s32.totalorder %s19, 1
      %s332 = scalar_select %p331, %s19, 1
      %s333 = smul.addr %s332, 2
      %s334 = smul.addr %s333, 8
      %s335 = scalar_lea.vmem %s1, %s334
      %p336 = scmp.lt.s32.totalorder %s19, 1
      %s337 = scalar_select %p336, %s19, 1
      %s338 = smul.addr %s337, 4
      %s339 = smul.addr %s338, 8
      %s340 = scalar_lea.vmem %s2, %s339
      %p341 = scmp.lt.s32.totalorder %s19, 1
      %s342 = scalar_select %p341, %s19, 1
      %s343 = smul.addr %s342, 2
      %s344 = smul.addr %s343, 8
      %s345 = scalar_lea.vmem %s8, %s344
      %349 = vst [vmem:[#allocation2] sm:$0xf] 0
      %350 = vst [vmem:[#allocation2 + $0x10] sm:$0xf] 0
      %351 = vst [vmem:[#allocation2 + $0x20] sm:$0xf] 0
      %352 = vst [vmem:[#allocation2 + $0xc] sm:$0xf] 0
      %353 = vst [vmem:[#allocation2 + $0x1c] sm:$0xf] 0
      %354 = vst [vmem:[#allocation2 + $0x2c] sm:$0xf] 0
      %v355 = vld [vmem:[%s330] sm:$0xff]
      %v356 = vld [vmem:[%s330 + $0x8] sm:$0xff]
      %v357 = vpack.c.bf16 %v355, %v355
      %v358 = vpack.c.bf16 %v356, %v356
      %v361 = vunpack.c.l.b16 %v357
      %v362 = vunpack.c.l.b16 %v358
      %v363 = vpack.c.b16 %v362, %v361
      %365 = vst [vmem:[#allocation2 + $0x4] sm:$0xff] %v363
      %v366 = vld [vmem:[%s335] sm:$0xff]
      %v367 = vld [vmem:[%s335 + $0x8] sm:$0xff]
      %v368 = vpack.c.bf16 %v366, %v366
      %v369 = vpack.c.bf16 %v367, %v367
      %v372 = vunpack.c.l.b16 %v368
      %v373 = vunpack.c.l.b16 %v369
      %v374 = vpack.c.b16 %v373, %v372
      %376 = vst [vmem:[#allocation2 + $0x24] sm:$0xff] %v374
      %v377 = vld [vmem:[%s340] sm:$0xff]
      %v378 = vld [vmem:[%s340 + $0x8] sm:$0xff]
      %v379 = vld [vmem:[%s340 + $0x10] sm:$0xff]
      %v380 = vld [vmem:[%s340 + $0x18] sm:$0xff]
      %v381 = vld [vmem:[%s3] sm:$0xff]
      %vm382 = vcmask 64512
      %v384 = vsel %vm382, %v377, 0
      %v387 = vsel %vm382, %v378, 0
      %v390 = vsel %vm382, %v379, 0
      %v393 = vsel %vm382, %v380, 0
      %395 = vmatprep.subr.mxu0 0.0
      %396 = vmatpush1.msra.mxu0 0.0
      %397 = vmatprep.subr.mxu0 0.0
      %398 = vmatpush1.msra.mxu0 0.0
      %399 = vmatprep.subr.mxu0 0.0
      %400 = vmatpush1.msra.mxu0 0.0
      %401 = vmatprep.subr.mxu0 0.0
      %402 = vmatpush1.msra.mxu0 0.0
      %403 = vmatprep.subr.mxu0 0.0
      %404 = vmatpush1.msra.mxu0 0.0
      %405 = vmatprep.subr.mxu0 0.0
      %406 = vmatpush1.msra.mxu0 0.0
      %407 = vmatprep.subr.mxu0 0.0
      %408 = vmatpush1.msra.mxu0 0.0
      %409 = vmatprep.subr.mxu0 0.0
      %410 = vmatpush1.msra.mxu0 0.0
      %411 = vmatprep.subr.mxu0 0.0
      %412 = vmatpush1.msra.mxu0 0.0
      %413 = vmatprep.subr.mxu0 0.0
      %414 = vmatpush1.msra.mxu0 0.0
      %415 = vmatprep.subr.mxu0 0.0
      %416 = vmatpush1.msra.mxu0 0.0
      %417 = vmatprep.subr.mxu0 0.0
      %418 = vmatpush1.msra.mxu0 0.0
      %419 = vmatprep.subr.mxu0 0.0
      %420 = vmatpush1.msra.mxu0 0.0
      %421 = vmatprep.subr.mxu0 0.0
      %422 = vmatpush1.msra.mxu0 0.0
      %423 = vmatprep.subr.mxu0 0.0
      %424 = vmatpush1.msra.mxu0 0.0
      %425 = vmatprep.subr.mxu0 0.0
      %426 = vmatpush1.msra.mxu0 %v381
      %427 = vmatprep.subr.mxu0 0.0
      %428 = vmatpush2.msra.mxu0 0.0
      %429 = vmatprep.subr.mxu0 0.0
      %430 = vmatpush2.msra.mxu0 0.0
      %431 = vmatprep.subr.mxu0 0.0
      %432 = vmatpush2.msra.mxu0 0.0
      %433 = vmatprep.subr.mxu0 0.0
      %434 = vmatpush2.msra.mxu0 0.0
      %435 = vmatprep.subr.mxu0 0.0
      %436 = vmatpush2.msra.mxu0 0.0
      %437 = vmatprep.subr.mxu0 0.0
      %438 = vmatpush2.msra.mxu0 0.0
      %439 = vmatprep.subr.mxu0 0.0
      %440 = vmatpush2.msra.mxu0 0.0
      %441 = vmatprep.subr.mxu0 0.0
      %442 = vmatpush2.msra.mxu0 0.0
      %443 = vmatprep.subr.mxu0 0.0
      %444 = vmatpush2.msra.mxu0 0.0
      %445 = vmatprep.subr.mxu0 0.0
      %446 = vmatpush2.msra.mxu0 0.0
      %447 = vmatprep.subr.mxu0 0.0
      %448 = vmatpush2.msra.mxu0 0.0
      %449 = vmatprep.subr.mxu0 0.0
      %450 = vmatpush2.msra.mxu0 0.0
      %451 = vmatprep.subr.mxu0 0.0
      %452 = vmatpush2.msra.mxu0 0.0
      %453 = vmatprep.subr.mxu0 0.0
      %454 = vmatpush2.msra.mxu0 0.0
      %455 = vmatprep.subr.mxu0 0.0
      %456 = vmatpush2.msra.mxu0 0.0
      %457 = vmatprep.subr.mxu0 0.0
      %458 = vmatpush2.msra.mxu0 0.0
      %459 = vmatprep.mubr.f32.mxu0 0.0
      %460 = vmatmul.mubr.f32.gmra.mxu0 %v384
      %v461 = vpop.f32.mrf.mxu0
      %v462 = vadd.f32 0.0, %v461
      %v463 = vpop.f32.mrf.mxu0
      %464 = vmatprep.mubr.f32.mxu0 0.0
      %465 = vmatmul.mubr.f32.gmra.mxu0 %v387
      %v466 = vpop.f32.mrf.mxu0
      %v467 = vadd.f32 0.0, %v466
      %v468 = vpop.f32.mrf.mxu0
      %469 = vmatprep.mubr.f32.mxu0 0.0
      %470 = vmatmul.mubr.f32.gmra.mxu0 %v390
      %v471 = vpop.f32.mrf.mxu0
      %v472 = vadd.f32 0.0, %v471
      %v473 = vpop.f32.mrf.mxu0
      %474 = vmatprep.mubr.f32.mxu0 0.0
      %475 = vmatmul.mubr.f32.gmra.mxu0 %v393
      %v476 = vpop.f32.mrf.mxu0
      %v477 = vadd.f32 0.0, %v476
      %v478 = vpop.f32.mrf.mxu0
      %479 = vdwg.mxu0
      %v480 = vmul.f32 %v462, 0.53333336
      %v481 = vmul.f32 %v462, 0.46666667
      %v483 = vrot.slane %v481, 4
      %v485 = vadd.f32 %v480, %v483
      %v486 = vmul.f32 %v462, 0.06666667
      %v487 = vmul.f32 %v462, 0.93333334
      %v489 = vrot.slane %v487, 4
      %v491 = vadd.f32 %v486, %v489
      %v492 = vmul.f32 %v462, 0.6
      %v493 = vmul.f32 %v467, 0.4
      %v495 = vrot.slane %v493, 4
      %v497 = vadd.f32 %v492, %v495
      %v498 = vmul.f32 %v462, 0.13333334
      %v499 = vmul.f32 %v467, 0.8666667
      %v501 = vrot.slane %v499, 4
      %v503 = vadd.f32 %v498, %v501
      %v504 = vmul.f32 %v467, 0.6666667
      %v505 = vmul.f32 %v467, 0.33333334
      %v507 = vrot.slane %v505, 4
      %v509 = vadd.f32 %v504, %v507
      %v510 = vmul.f32 %v467, 0.2
      %v511 = vmul.f32 %v467, 0.8
      %v513 = vrot.slane %v511, 4
      %v515 = vadd.f32 %v510, %v513
      %v516 = vmul.f32 %v467, 0.73333335
      %v517 = vmul.f32 %v472, 0.26666668
      %v519 = vrot.slane %v517, 4
      %v521 = vadd.f32 %v516, %v519
      %v522 = vmul.f32 %v467, 0.26666668
      %v523 = vmul.f32 %v472, 0.73333335
      %v525 = vrot.slane %v523, 4
      %v527 = vadd.f32 %v522, %v525
      %v528 = vmul.f32 %v472, 0.8
      %v529 = vmul.f32 %v472, 0.2
      %v531 = vrot.slane %v529, 4
      %v533 = vadd.f32 %v528, %v531
      %v534 = vmul.f32 %v472, 0.33333334
      %v535 = vmul.f32 %v472, 0.6666667
      %v537 = vrot.slane %v535, 4
      %v539 = vadd.f32 %v534, %v537
      %v540 = vmul.f32 %v472, 0.8666667
      %v541 = vmul.f32 %v477, 0.13333334
      %v543 = vrot.slane %v541, 4
      %v545 = vadd.f32 %v540, %v543
      %v546 = vmul.f32 %v472, 0.4
      %v547 = vmul.f32 %v477, 0.6
      %v549 = vrot.slane %v547, 4
      %v551 = vadd.f32 %v546, %v549
      %v552 = vmul.f32 %v477, 0.93333334
      %v553 = vmul.f32 %v477, 0.06666667
      %v555 = vrot.slane %v553, 4
      %v557 = vadd.f32 %v552, %v555
      %v558 = vmul.f32 %v477, 0.46666667
      %v559 = vmul.f32 %v477, 0.53333336
      %v561 = vrot.slane %v559, 4
      %v563 = vadd.f32 %v558, %v561
      %v564 = vmul.f32 %v477, 0.0
      %v566 = vrot.slane %v477, 4
      %v568 = vadd.f32 %v564, %v566
      %570 = vrot.lane.b32.xlu0 %v485, 16
      %v571 = vpop.permute.xlu0 %570
      %574 = vrot.lane.b32.xlu0 %v491, 32
      %v575 = vpop.permute.xlu0 %574
      %v578 = vrot.slane %v497, 4
      %579 = vrot.lane.b32.xlu0 %v578, 48
      %v580 = vpop.permute.xlu0 %579
      %v583 = vrot.slane %v503, 4
      %584 = vrot.lane.b32.xlu0 %v583, 64
      %v585 = vpop.permute.xlu0 %584
      %588 = vrot.lane.b32.xlu0 %v509, 80
      %v589 = vpop.permute.xlu0 %588
      %592 = vrot.lane.b32.xlu0 %v515, 96
      %v593 = vpop.permute.xlu0 %592
      %v596 = vrot.slane %v521, 4
      %597 = vrot.lane.b32.xlu0 %v596, 112
      %v598 = vpop.permute.xlu0 %597
      %v601 = vrot.slane %v527, 4
      %604 = vrot.lane.b32.xlu0 %v533, 16
      %v605 = vpop.permute.xlu0 %604
      %608 = vrot.lane.b32.xlu0 %v539, 32
      %v609 = vpop.permute.xlu0 %608
      %v612 = vrot.slane %v545, 4
      %613 = vrot.lane.b32.xlu0 %v612, 48
      %v614 = vpop.permute.xlu0 %613
      %v617 = vrot.slane %v551, 4
      %618 = vrot.lane.b32.xlu0 %v617, 64
      %v619 = vpop.permute.xlu0 %618
      %622 = vrot.lane.b32.xlu0 %v557, 80
      %v623 = vpop.permute.xlu0 %622
      %626 = vrot.lane.b32.xlu0 %v563, 96
      %v627 = vpop.permute.xlu0 %626
      %630 = vrot.lane.b32.xlu0 %v568, 112
      %v631 = vpop.permute.xlu0 %630
      %vm633 = vcmask 130048
      %v634 = vsel %vm633, %v462, %v571
      %vm635 = vcmask 261120
      %v636 = vsel %vm635, %v634, %v575
      %vm637 = vcmask 392192
      %v638 = vsel %vm637, %v636, %v580
      %vm639 = vcmask 523264
      %v640 = vsel %vm639, %v638, %v585
      %vm641 = vcmask 654336
      %v642 = vsel %vm641, %v640, %v589
      %vm643 = vcmask 785408
      %v644 = vsel %vm643, %v642, %v593
      %vm645 = vcmask 916480
      %v646 = vsel %vm645, %v644, %v598
      %v647 = vsel %vm633, %v601, %v605
      %v648 = vsel %vm635, %v647, %v609
      %v649 = vsel %vm637, %v648, %v614
      %v650 = vsel %vm639, %v649, %v619
      %v651 = vsel %vm641, %v650, %v623
      %v652 = vsel %vm643, %v651, %v627
      %v653 = vsel %vm645, %v652, %v631
      %v654 = vld [vmem:[%s4] sm:$0xff]
      %vm655 = vcmask 31744
      %v657 = vsel %vm655, %v654, 0
      %vm659 = vcmask 1043456
      %v661 = vsel %vm659, %v646, 0
      %v664 = vsel %vm659, %v653, 0
      %666 = vmatprep.subr.mxu0 0.0
      %667 = vmatpush1.msra.mxu0 0.0
      %668 = vmatprep.subr.mxu0 0.0
      %669 = vmatpush1.msra.mxu0 0.0
      %670 = vmatprep.subr.mxu0 0.0
      %671 = vmatpush1.msra.mxu0 0.0
      %672 = vmatprep.subr.mxu0 0.0
      %673 = vmatpush1.msra.mxu0 0.0
      %674 = vmatprep.subr.mxu0 0.0
      %675 = vmatpush1.msra.mxu0 0.0
      %676 = vmatprep.subr.mxu0 0.0
      %677 = vmatpush1.msra.mxu0 0.0
      %678 = vmatprep.subr.mxu0 0.0
      %679 = vmatpush1.msra.mxu0 0.0
      %680 = vmatprep.subr.mxu0 0.0
      %681 = vmatpush1.msra.mxu0 0.0
      %682 = vmatprep.subr.mxu0 0.0
      %683 = vmatpush1.msra.mxu0 0.0
      %684 = vmatprep.subr.mxu0 0.0
      %685 = vmatpush1.msra.mxu0 0.0
      %686 = vmatprep.subr.mxu0 0.0
      %687 = vmatpush1.msra.mxu0 0.0
      %688 = vmatprep.subr.mxu0 0.0
      %689 = vmatpush1.msra.mxu0 0.0
      %690 = vmatprep.subr.mxu0 0.0
      %691 = vmatpush1.msra.mxu0 0.0
      %692 = vmatprep.subr.mxu0 0.0
      %693 = vmatpush1.msra.mxu0 0.0
      %694 = vmatprep.subr.mxu0 0.0
      %695 = vmatpush1.msra.mxu0 0.0
      %696 = vmatprep.subr.mxu0 %v664
      %697 = vmatpush1.msra.mxu0 %v661
      %698 = vmatprep.subr.mxu0 0.0
      %699 = vmatpush2.msra.mxu0 0.0
      %700 = vmatprep.subr.mxu0 0.0
      %701 = vmatpush2.msra.mxu0 0.0
      %702 = vmatprep.subr.mxu0 0.0
      %703 = vmatpush2.msra.mxu0 0.0
      %704 = vmatprep.subr.mxu0 0.0
      %705 = vmatpush2.msra.mxu0 0.0
      %706 = vmatprep.subr.mxu0 0.0
      %707 = vmatpush2.msra.mxu0 0.0
      %708 = vmatprep.subr.mxu0 0.0
      %709 = vmatpush2.msra.mxu0 0.0
      %710 = vmatprep.subr.mxu0 0.0
      %711 = vmatpush2.msra.mxu0 0.0
      %712 = vmatprep.subr.mxu0 0.0
      %713 = vmatpush2.msra.mxu0 0.0
      %714 = vmatprep.subr.mxu0 0.0
      %715 = vmatpush2.msra.mxu0 0.0
      %716 = vmatprep.subr.mxu0 0.0
      %717 = vmatpush2.msra.mxu0 0.0
      %718 = vmatprep.subr.mxu0 0.0
      %719 = vmatpush2.msra.mxu0 0.0
      %720 = vmatprep.subr.mxu0 0.0
      %721 = vmatpush2.msra.mxu0 0.0
      %722 = vmatprep.subr.mxu0 0.0
      %723 = vmatpush2.msra.mxu0 0.0
      %724 = vmatprep.subr.mxu0 0.0
      %725 = vmatpush2.msra.mxu0 0.0
      %726 = vmatprep.subr.mxu0 0.0
      %727 = vmatpush2.msra.mxu0 0.0
      %728 = vmatprep.subr.mxu0 0.0
      %729 = vmatpush2.msra.mxu0 0.0
      %730 = vmatprep.mubr.f32.mxu0 0.0
      %731 = vmatmul.mubr.f32.gmra.mxu0 %v657
      %v732 = vpop.f32.mrf.mxu0
      %v733 = vadd.f32 0.0, %v732
      %v734 = vpop.f32.mrf.mxu0
      %v735 = vadd.f32 0.0, %v734
      %736 = vdwg.mxu0
      %v737 = vmax.f32 %v733, 0.0
      %v738 = vmax.f32 %v735, 0.0
      %v739 = vpack.c.bf16 %v737, %v737
      %v740 = vpack.c.bf16 %v738, %v738
      %v743 = vunpack.c.l.b16 %v739
      %v744 = vunpack.c.l.b16 %v740
      %v745 = vpack.c.b16 %v744, %v743
      %747 = vst [vmem:[#allocation2 + $0x14] sm:$0xff] %v745
      %v748 = vlaneseq
      %v749 = vand.u32 %v748, 127
      %v750 = vadd.s32 %v749, 128
      %vm751 = vcmp.lt.s32.totalorder %v749, 0
      %v752 = vsub.s32 0, %v749
      %v753 = vsel %vm751, %v752, %v749
      %v754 = vshrl.u32 %v753, 4
      %v755 = vand.u32 %v753, 15
      %v756 = vsub.s32 0, %v755
      %v757 = vsel %vm751, %v756, %v755
      %vm758 = vcmp.lt.s32.totalorder %v750, 0
      %v759 = vsub.s32 0, %v750
      %v760 = vsel %vm758, %v759, %v750
      %v761 = vshrl.u32 %v760, 4
      %v762 = vand.u32 %v760, 15
      %v763 = vsub.s32 0, %v762
      %v764 = vsel %vm758, %v763, %v762
      %vm765 = vcmp.ne.s32.totalorder %v757, 0
      %vm766 = vcmp.ne.s32.totalorder %v764, 0
      %vm767 = vcmp.lt.s32.totalorder %v757, 0
      %vm768 = vcmp.lt.s32.totalorder %v764, 0
      %vm769 = vmand %vm767, %vm765
      %vm770 = vmand %vm768, %vm766
      %v771 = vadd.s32 %v757, 16
      %v772 = vadd.s32 %v764, 16
      %v773 = vsel %vm769, %v771, %v757
      %v774 = vsel %vm770, %v772, %v764
      %vm775 = vcmp.ge.s32.totalorder %v773, 1
      %vm776 = vcmp.ge.s32.totalorder %v774, 1
      %vm777 = vcmp.le.s32.totalorder %v773, 14
      %vm778 = vcmp.le.s32.totalorder %v774, 14
      %v779 = vld [vmem:[#allocation2] sm:$0xff]
      %v780 = vld [vmem:[#allocation2 + $0x8] sm:$0xf]
      %v781 = vld [vmem:[#allocation2 + $0x10] sm:$0xff]
      %v782 = vld [vmem:[#allocation2 + $0x18] sm:$0xf]
      %v783 = vld [vmem:[#allocation2 + $0x20] sm:$0xff]
      %v784 = vld [vmem:[#allocation2 + $0x28] sm:$0xf]
      %v785 = vsel %vm775, 1, 0
      %v786 = vsel %vm776, 1, 0
      %vm787 = vcmp.eq.s32.totalorder %v785, 1
      %vm788 = vcmp.eq.s32.totalorder %v786, 1
      %vm789 = vmpackc.low %vm788, %vm787
      %v790 = vsel %vm789, 65537, 0
      %791 = vrot.lane.b32.xlu0 %v790, 111
      %v792 = vpop.permute.xlu0 %791
      %v793 = vrot.slane %v792, 4
      %vm794 = vcmask 908288
      %v795 = vsel %vm794, %v793, %v792
      %vm796 = vcmp.ne.s16.totalorder %v795, 0
      %vm797 = vcmp.ne.s16.totalorder %v793, 0
      %v798 = vsel %vm796, %v779, 0
      %v799 = vsel %vm797, %v780, 0
      %v800 = vsel %vm796, %v781, 0
      %v801 = vsel %vm797, %v782, 0
      %v802 = vsel %vm796, %v783, 0
      %v803 = vsel %vm797, %v784, 0
      %810 = vrot.lane.b32.xlu0 %v798, 17
      %v811 = vpop.permute.xlu0 %810
      %812 = vrot.lane.b32.xlu0 %v799, 17
      %v813 = vpop.permute.xlu0 %812
      %814 = vrot.lane.b32.xlu0 %v800, 17
      %v815 = vpop.permute.xlu0 %814
      %816 = vrot.lane.b32.xlu0 %v801, 17
      %v817 = vpop.permute.xlu0 %816
      %818 = vrot.lane.b32.xlu0 %v802, 17
      %v819 = vpop.permute.xlu0 %818
      %820 = vrot.lane.b32.xlu0 %v803, 17
      %v821 = vpop.permute.xlu0 %820
      %v822 = vrot.slane %v811, 4
      %v823 = vrot.slane %v813, 4
      %v824 = vrot.slane %v815, 4
      %v825 = vrot.slane %v817, 4
      %v826 = vrot.slane %v819, 4
      %v827 = vrot.slane %v821, 4
      %vm828 = vcmask 1043456
      %v829 = vsel %vm828, %v822, %v823
      %vm830 = vcmask 138240
      %v831 = vsel %vm830, %v811, %v829
      %v832 = vsel %vm828, %v824, %v825
      %v833 = vsel %vm830, %v815, %v832
      %v834 = vsel %vm828, %v826, %v827
      %v835 = vsel %vm830, %v819, %v834
      %839 = vst [vmem:[#allocation3] sm:$0xff] %v831
      %840 = vst [vmem:[#allocation3 + $0x8] sm:$0xff] %v833
      %841 = vst [vmem:[#allocation3 + $0x10] sm:$0xff] %v835
      %v842 = vld [vmem:[#allocation2] sm:$0xff]
      %v843 = vld [vmem:[#allocation2 + $0x8] sm:$0xf]
      %v844 = vld [vmem:[#allocation2 + $0x10] sm:$0xff]
      %v845 = vld [vmem:[#allocation2 + $0x18] sm:$0xf]
      %v846 = vld [vmem:[#allocation2 + $0x20] sm:$0xff]
      %v847 = vld [vmem:[#allocation2 + $0x28] sm:$0xf]
      %854 = vrot.lane.b32.xlu0 %v842, 16
      %v855 = vpop.permute.xlu0 %854
      %856 = vrot.lane.b32.xlu0 %v843, 16
      %v857 = vpop.permute.xlu0 %856
      %858 = vrot.lane.b32.xlu0 %v844, 16
      %v859 = vpop.permute.xlu0 %858
      %860 = vrot.lane.b32.xlu0 %v845, 16
      %v861 = vpop.permute.xlu0 %860
      %862 = vrot.lane.b32.xlu0 %v846, 16
      %v863 = vpop.permute.xlu0 %862
      %864 = vrot.lane.b32.xlu0 %v847, 16
      %v865 = vpop.permute.xlu0 %864
      %v866 = vrot.slane %v855, 4
      %v867 = vrot.slane %v857, 4
      %v868 = vrot.slane %v859, 4
      %v869 = vrot.slane %v861, 4
      %v870 = vrot.slane %v863, 4
      %v871 = vrot.slane %v865, 4
      %v872 = vsel %vm828, %v866, %v867
      %vm873 = vcmask 130048
      %v874 = vsel %vm873, %v855, %v872
      %v875 = vsel %vm828, %v868, %v869
      %v876 = vsel %vm873, %v859, %v875
      %v877 = vsel %vm828, %v870, %v871
      %v878 = vsel %vm873, %v863, %v877
      %882 = vst [vmem:[#allocation3 + $0x18] sm:$0xff] %v874
      %883 = vst [vmem:[#allocation3 + $0x20] sm:$0xff] %v876
      %884 = vst [vmem:[#allocation3 + $0x28] sm:$0xff] %v878
      %v885 = vld [vmem:[#allocation2] sm:$0xff]
      %v886 = vld [vmem:[#allocation2 + $0x8] sm:$0xf]
      %v887 = vld [vmem:[#allocation2 + $0x10] sm:$0xff]
      %v888 = vld [vmem:[#allocation2 + $0x18] sm:$0xf]
      %v889 = vld [vmem:[#allocation2 + $0x20] sm:$0xff]
      %v890 = vld [vmem:[#allocation2 + $0x28] sm:$0xf]
      %v891 = vsel %vm777, 1, 0
      %v892 = vsel %vm778, 1, 0
      %vm893 = vcmp.eq.s32.totalorder %v891, 1
      %vm894 = vcmp.eq.s32.totalorder %v892, 1
      %vm895 = vmpackc.low %vm894, %vm893
      %v896 = vsel %vm895, 65537, 0
      %897 = vrot.lane.b32.xlu0 %v896, 113
      %v898 = vpop.permute.xlu0 %897
      %v899 = vrot.slane %v898, 4
      %vm900 = vcmask 924672
      %v901 = vsel %vm900, %v899, %v898
      %vm902 = vcmp.ne.s16.totalorder %v901, 0
      %vm903 = vcmp.ne.s16.totalorder %v899, 0
      %v904 = vsel %vm902, %v885, 0
      %v905 = vsel %vm903, %v886, 0
      %v906 = vsel %vm902, %v887, 0
      %v907 = vsel %vm903, %v888, 0
      %v908 = vsel %vm902, %v889, 0
      %v909 = vsel %vm903, %v890, 0
      %916 = vrot.lane.b32.xlu0 %v904, 15
      %v917 = vpop.permute.xlu0 %916
      %918 = vrot.lane.b32.xlu0 %v905, 15
      %v919 = vpop.permute.xlu0 %918
      %920 = vrot.lane.b32.xlu0 %v906, 15
      %v921 = vpop.permute.xlu0 %920
      %922 = vrot.lane.b32.xlu0 %v907, 15
      %v923 = vpop.permute.xlu0 %922
      %924 = vrot.lane.b32.xlu0 %v908, 15
      %v925 = vpop.permute.xlu0 %924
      %926 = vrot.lane.b32.xlu0 %v909, 15
      %v927 = vpop.permute.xlu0 %926
      %v928 = vrot.slane %v917, 4
      %v929 = vrot.slane %v919, 4
      %v930 = vrot.slane %v921, 4
      %v931 = vrot.slane %v923, 4
      %v932 = vrot.slane %v925, 4
      %v933 = vrot.slane %v927, 4
      %v934 = vsel %vm828, %v928, %v929
      %vm935 = vcmask 121856
      %v936 = vsel %vm935, %v917, %v934
      %v937 = vsel %vm828, %v930, %v931
      %v938 = vsel %vm935, %v921, %v937
      %v939 = vsel %vm828, %v932, %v933
      %v940 = vsel %vm935, %v925, %v939
      %944 = vst [vmem:[#allocation3 + $0x30] sm:$0xff] %v936
      %945 = vst [vmem:[#allocation3 + $0x38] sm:$0xff] %v938
      %946 = vst [vmem:[#allocation3 + $0x40] sm:$0xff] %v940
      %v947 = vld [vmem:[#allocation2] sm:$0xff]
      %v948 = vld [vmem:[#allocation2 + $0x8] sm:$0xf]
      %v949 = vld [vmem:[#allocation2 + $0x10] sm:$0xff]
      %v950 = vld [vmem:[#allocation2 + $0x18] sm:$0xf]
      %v951 = vld [vmem:[#allocation2 + $0x20] sm:$0xff]
      %v952 = vld [vmem:[#allocation2 + $0x28] sm:$0xf]
      %953 = vrot.lane.b32.xlu0 %v790, 127
      %v954 = vpop.permute.xlu0 %953
      %v955 = vrot.slane %v954, 4
      %vm956 = vcmask 1039360
      %v957 = vsel %vm956, %v955, %v954
      %vm958 = vcmp.ne.s16.totalorder %v957, 0
      %vm959 = vcmp.ne.s16.totalorder %v955, 0
      %v960 = vsel %vm958, %v947, 0
      %v961 = vsel %vm959, %v948, 0
      %v962 = vsel %vm958, %v949, 0
      %v963 = vsel %vm959, %v950, 0
      %v964 = vsel %vm958, %v951, 0
      %v965 = vsel %vm959, %v952, 0
      %972 = vrot.lane.b32.xlu0 %v960, 1
      %v973 = vpop.permute.xlu0 %972
      %974 = vrot.lane.b32.xlu0 %v961, 1
      %v975 = vpop.permute.xlu0 %974
      %976 = vrot.lane.b32.xlu0 %v962, 1
      %v977 = vpop.permute.xlu0 %976
      %978 = vrot.lane.b32.xlu0 %v963, 1
      %v979 = vpop.permute.xlu0 %978
      %980 = vrot.lane.b32.xlu0 %v964, 1
      %v981 = vpop.permute.xlu0 %980
      %982 = vrot.lane.b32.xlu0 %v965, 1
      %v983 = vpop.permute.xlu0 %982
      %v984 = vrot.slane %v973, 4
      %v985 = vrot.slane %v975, 4
      %v986 = vrot.slane %v977, 4
      %v987 = vrot.slane %v979, 4
      %v988 = vrot.slane %v981, 4
      %v989 = vrot.slane %v983, 4
      %v990 = vsel %vm828, %v984, %v985
      %vm991 = vcmask 7168
      %v992 = vsel %vm991, %v973, %v990
      %v993 = vsel %vm828, %v986, %v987
      %v994 = vsel %vm991, %v977, %v993
      %v995 = vsel %vm828, %v988, %v989
      %v996 = vsel %vm991, %v981, %v995
      %1000 = vst [vmem:[#allocation3 + $0x48] sm:$0xff] %v992
      %1001 = vst [vmem:[#allocation3 + $0x50] sm:$0xff] %v994
      %1002 = vst [vmem:[#allocation3 + $0x58] sm:$0xff] %v996
      %v1003 = vld [vmem:[#allocation2 + $0x4] sm:$0xff]
      %v1004 = vld [vmem:[#allocation2 + $0x14] sm:$0xff]
      %v1005 = vld [vmem:[#allocation2 + $0x24] sm:$0xff]
      %1006 = vst [vmem:[#allocation3 + $0x60] sm:$0xff] %v1003
      %1007 = vst [vmem:[#allocation3 + $0x68] sm:$0xff] %v1004
      %1008 = vst [vmem:[#allocation3 + $0x70] sm:$0xff] %v1005
      %v1009 = vld [vmem:[#allocation2 + $0x4] sm:$0xff]
      %v1010 = vld [vmem:[#allocation2 + $0xc] sm:$0xf]
      %v1011 = vld [vmem:[#allocation2 + $0x14] sm:$0xff]
      %v1012 = vld [vmem:[#allocation2 + $0x1c] sm:$0xf]
      %v1013 = vld [vmem:[#allocation2 + $0x24] sm:$0xff]
      %v1014 = vld [vmem:[#allocation2 + $0x2c] sm:$0xf]
      %1015 = vrot.lane.b32.xlu0 %v896, 1
      %v1016 = vpop.permute.xlu0 %1015
      %v1017 = vrot.slane %v1016, 4
      %v1018 = vsel %vm991, %v1017, %v1016
      %vm1019 = vcmp.ne.s16.totalorder %v1018, 0
      %vm1020 = vcmp.ne.s16.totalorder %v1017, 0
      %v1021 = vsel %vm1019, %v1009, 0
      %v1022 = vsel %vm1020, %v1010, 0
      %v1023 = vsel %vm1019, %v1011, 0
      %v1024 = vsel %vm1020, %v1012, 0
      %v1025 = vsel %vm1019, %v1013, 0
      %v1026 = vsel %vm1020, %v1014, 0
      %1033 = vrot.lane.b32.xlu0 %v1021, 127
      %v1034 = vpop.permute.xlu0 %1033
      %1035 = vrot.lane.b32.xlu0 %v1022, 127
      %v1036 = vpop.permute.xlu0 %1035
      %1037 = vrot.lane.b32.xlu0 %v1023, 127
      %v1038 = vpop.permute.xlu0 %1037
      %1039 = vrot.lane.b32.xlu0 %v1024, 127
      %v1040 = vpop.permute.xlu0 %1039
      %1041 = vrot.lane.b32.xlu0 %v1025, 127
      %v1042 = vpop.permute.xlu0 %1041
      %1043 = vrot.lane.b32.xlu0 %v1026, 127
      %v1044 = vpop.permute.xlu0 %1043
      %v1045 = vrot.slane %v1034, 4
      %v1046 = vrot.slane %v1036, 4
      %v1047 = vrot.slane %v1038, 4
      %v1048 = vrot.slane %v1040, 4
      %v1049 = vrot.slane %v1042, 4
      %v1050 = vrot.slane %v1044, 4
      %v1051 = vsel %vm828, %v1045, %v1046
      %v1052 = vsel %vm956, %v1034, %v1051
      %v1053 = vsel %vm828, %v1047, %v1048
      %v1054 = vsel %vm956, %v1038, %v1053
      %v1055 = vsel %vm828, %v1049, %v1050
      %v1056 = vsel %vm956, %v1042, %v1055
      %1060 = vst [vmem:[#allocation3 + $0x78] sm:$0xff] %v1052
      %1061 = vst [vmem:[#allocation3 + $0x80] sm:$0xff] %v1054
      %1062 = vst [vmem:[#allocation3 + $0x88] sm:$0xff] %v1056
      %v1063 = vld [vmem:[#allocation2 + $0x4] sm:$0xff]
      %v1064 = vld [vmem:[#allocation2 + $0xc] sm:$0xf]
      %v1065 = vld [vmem:[#allocation2 + $0x14] sm:$0xff]
      %v1066 = vld [vmem:[#allocation2 + $0x1c] sm:$0xf]
      %v1067 = vld [vmem:[#allocation2 + $0x24] sm:$0xff]
      %v1068 = vld [vmem:[#allocation2 + $0x2c] sm:$0xf]
      %1069 = vrot.lane.b32.xlu0 %v790, 15
      %v1070 = vpop.permute.xlu0 %1069
      %v1071 = vrot.slane %v1070, 4
      %v1072 = vsel %vm935, %v1071, %v1070
      %vm1073 = vcmp.ne.s16.totalorder %v1072, 0
      %vm1074 = vcmp.ne.s16.totalorder %v1071, 0
      %v1075 = vsel %vm1073, %v1063, 0
      %v1076 = vsel %vm1074, %v1064, 0
      %v1077 = vsel %vm1073, %v1065, 0
      %v1078 = vsel %vm1074, %v1066, 0
      %v1079 = vsel %vm1073, %v1067, 0
      %v1080 = vsel %vm1074, %v1068, 0
      %1087 = vrot.lane.b32.xlu0 %v1075, 113
      %v1088 = vpop.permute.xlu0 %1087
      %1089 = vrot.lane.b32.xlu0 %v1076, 113
      %v1090 = vpop.permute.xlu0 %1089
      %1091 = vrot.lane.b32.xlu0 %v1077, 113
      %v1092 = vpop.permute.xlu0 %1091
      %1093 = vrot.lane.b32.xlu0 %v1078, 113
      %v1094 = vpop.permute.xlu0 %1093
      %1095 = vrot.lane.b32.xlu0 %v1079, 113
      %v1096 = vpop.permute.xlu0 %1095
      %1097 = vrot.lane.b32.xlu0 %v1080, 113
      %v1098 = vpop.permute.xlu0 %1097
      %v1099 = vrot.slane %v1088, 4
      %v1100 = vrot.slane %v1090, 4
      %v1101 = vrot.slane %v1092, 4
      %v1102 = vrot.slane %v1094, 4
      %v1103 = vrot.slane %v1096, 4
      %v1104 = vrot.slane %v1098, 4
      %v1105 = vsel %vm828, %v1099, %v1100
      %v1106 = vsel %vm900, %v1088, %v1105
      %v1107 = vsel %vm828, %v1101, %v1102
      %v1108 = vsel %vm900, %v1092, %v1107
      %v1109 = vsel %vm828, %v1103, %v1104
      %v1110 = vsel %vm900, %v1096, %v1109
      %1114 = vst [vmem:[#allocation3 + $0x90] sm:$0xff] %v1106
      %1115 = vst [vmem:[#allocation3 + $0x98] sm:$0xff] %v1108
      %1116 = vst [vmem:[#allocation3 + $0xa0] sm:$0xff] %v1110
      %v1117 = vld [vmem:[#allocation2 + $0x4] sm:$0xff]
      %v1118 = vld [vmem:[#allocation2 + $0xc] sm:$0xf]
      %v1119 = vld [vmem:[#allocation2 + $0x14] sm:$0xff]
      %v1120 = vld [vmem:[#allocation2 + $0x1c] sm:$0xf]
      %v1121 = vld [vmem:[#allocation2 + $0x24] sm:$0xff]
      %v1122 = vld [vmem:[#allocation2 + $0x2c] sm:$0xf]
      %1129 = vrot.lane.b32.xlu0 %v1117, 112
      %v1130 = vpop.permute.xlu0 %1129
      %1131 = vrot.lane.b32.xlu0 %v1118, 112
      %v1132 = vpop.permute.xlu0 %1131
      %1133 = vrot.lane.b32.xlu0 %v1119, 112
      %v1134 = vpop.permute.xlu0 %1133
      %1135 = vrot.lane.b32.xlu0 %v1120, 112
      %v1136 = vpop.permute.xlu0 %1135
      %1137 = vrot.lane.b32.xlu0 %v1121, 112
      %v1138 = vpop.permute.xlu0 %1137
      %1139 = vrot.lane.b32.xlu0 %v1122, 112
      %v1140 = vpop.permute.xlu0 %1139
      %v1141 = vrot.slane %v1130, 4
      %v1142 = vrot.slane %v1132, 4
      %v1143 = vrot.slane %v1134, 4
      %v1144 = vrot.slane %v1136, 4
      %v1145 = vrot.slane %v1138, 4
      %v1146 = vrot.slane %v1140, 4
      %v1147 = vsel %vm828, %v1141, %v1142
      %vm1148 = vcmask 916480
      %v1149 = vsel %vm1148, %v1130, %v1147
      %v1150 = vsel %vm828, %v1143, %v1144
      %v1151 = vsel %vm1148, %v1134, %v1150
      %v1152 = vsel %vm828, %v1145, %v1146
      %v1153 = vsel %vm1148, %v1138, %v1152
      %1157 = vst [vmem:[#allocation3 + $0xa8] sm:$0xff] %v1149
      %1158 = vst [vmem:[#allocation3 + $0xb0] sm:$0xff] %v1151
      %1159 = vst [vmem:[#allocation3 + $0xb8] sm:$0xff] %v1153
      %v1160 = vld [vmem:[#allocation2 + $0x4] sm:$0xff]
      %v1161 = vld [vmem:[#allocation2 + $0xc] sm:$0xf]
      %v1162 = vld [vmem:[#allocation2 + $0x14] sm:$0xff]
      %v1163 = vld [vmem:[#allocation2 + $0x1c] sm:$0xf]
      %v1164 = vld [vmem:[#allocation2 + $0x24] sm:$0xff]
      %v1165 = vld [vmem:[#allocation2 + $0x2c] sm:$0xf]
      %1166 = vrot.lane.b32.xlu0 %v896, 17
      %v1167 = vpop.permute.xlu0 %1166
      %v1168 = vrot.slane %v1167, 4
      %v1169 = vsel %vm830, %v1168, %v1167
      %vm1170 = vcmp.ne.s16.totalorder %v1169, 0
      %vm1171 = vcmp.ne.s16.totalorder %v1168, 0
      %v1172 = vsel %vm1170, %v1160, 0
      %v1173 = vsel %vm1171, %v1161, 0
      %v1174 = vsel %vm1170, %v1162, 0
      %v1175 = vsel %vm1171, %v1163, 0
      %v1176 = vsel %vm1170, %v1164, 0
      %v1177 = vsel %vm1171, %v1165, 0
      %1184 = vrot.lane.b32.xlu0 %v1172, 111
      %v1185 = vpop.permute.xlu0 %1184
      %1186 = vrot.lane.b32.xlu0 %v1173, 111
      %v1187 = vpop.permute.xlu0 %1186
      %1188 = vrot.lane.b32.xlu0 %v1174, 111
      %v1189 = vpop.permute.xlu0 %1188
      %1190 = vrot.lane.b32.xlu0 %v1175, 111
      %v1191 = vpop.permute.xlu0 %1190
      %1192 = vrot.lane.b32.xlu0 %v1176, 111
      %v1193 = vpop.permute.xlu0 %1192
      %1194 = vrot.lane.b32.xlu0 %v1177, 111
      %v1195 = vpop.permute.xlu0 %1194
      %v1196 = vrot.slane %v1185, 4
      %v1197 = vrot.slane %v1187, 4
      %v1198 = vrot.slane %v1189, 4
      %v1199 = vrot.slane %v1191, 4
      %v1200 = vrot.slane %v1193, 4
      %v1201 = vrot.slane %v1195, 4
      %v1202 = vsel %vm828, %v1196, %v1197
      %v1203 = vsel %vm794, %v1185, %v1202
      %v1204 = vsel %vm828, %v1198, %v1199
      %v1205 = vsel %vm794, %v1189, %v1204
      %v1206 = vsel %vm828, %v1200, %v1201
      %v1207 = vsel %vm794, %v1193, %v1206
      %1211 = vst [vmem:[#allocation3 + $0xc0] sm:$0xff] %v1203
      %1212 = vst [vmem:[#allocation3 + $0xc8] sm:$0xff] %v1205
      %1213 = vst [vmem:[#allocation3 + $0xd0] sm:$0xff] %v1207
      %v1214 = vld [vmem:[%s5] sm:$0xff]
      %v1215 = vld [vmem:[#allocation3] sm:$0xff]
      %v1216 = vld [vmem:[#allocation3 + $0x8] sm:$0xff]
      %v1217 = vld [vmem:[#allocation3 + $0x10] sm:$0xff]
      %v1218 = vld [vmem:[#allocation3 + $0x18] sm:$0xff]
      %v1219 = vld [vmem:[#allocation3 + $0x20] sm:$0xff]
      %v1220 = vld [vmem:[#allocation3 + $0x28] sm:$0xff]
      %v1221 = vld [vmem:[#allocation3 + $0x30] sm:$0xff]
      %v1222 = vld [vmem:[#allocation3 + $0x38] sm:$0xff]
      %v1223 = vld [vmem:[#allocation3 + $0x40] sm:$0xff]
      %v1224 = vld [vmem:[#allocation3 + $0x48] sm:$0xff]
      %v1225 = vld [vmem:[#allocation3 + $0x50] sm:$0xff]
      %v1226 = vld [vmem:[#allocation3 + $0x58] sm:$0xff]
      %v1227 = vld [vmem:[#allocation3 + $0x60] sm:$0xff]
      %v1228 = vld [vmem:[#allocation3 + $0x68] sm:$0xff]
      %v1229 = vld [vmem:[#allocation3 + $0x70] sm:$0xff]
      %v1230 = vld [vmem:[#allocation3 + $0x78] sm:$0xff]
      %v1231 = vld [vmem:[#allocation3 + $0x80] sm:$0xff]
      %v1232 = vld [vmem:[#allocation3 + $0x88] sm:$0xff]
      %v1233 = vld [vmem:[#allocation3 + $0x90] sm:$0xff]
      %v1234 = vld [vmem:[#allocation3 + $0x98] sm:$0xff]
      %v1235 = vld [vmem:[#allocation3 + $0xa0] sm:$0xff]
      %v1236 = vld [vmem:[#allocation3 + $0xa8] sm:$0xff]
      %v1237 = vld [vmem:[#allocation3 + $0xb0] sm:$0xff]
      %v1238 = vld [vmem:[#allocation3 + $0xb8] sm:$0xff]
      %v1239 = vld [vmem:[#allocation3 + $0xc0] sm:$0xff]
      %v1240 = vld [vmem:[#allocation3 + $0xc8] sm:$0xff]
      %v1241 = vld [vmem:[#allocation3 + $0xd0] sm:$0xff]
      %v1243 = vunpack.c.l.b16 %v1214
      %v1244 = vunpack.c.h.b16 %v1214
      %v1245 = vpack.c.b16 %v1243, %v1243
      %v1246 = vpack.c.b16 %v1244, %v1244
      %v1275 = vunpack.c.l.b16 %v1215
      %v1276 = vunpack.c.h.b16 %v1215
      %v1277 = vunpack.c.l.b16 %v1216
      %v1278 = vunpack.c.h.b16 %v1216
      %v1279 = vunpack.c.l.b16 %v1217
      %v1280 = vunpack.c.h.b16 %v1217
      %v1281 = vunpack.c.l.b16 %v1218
      %v1282 = vunpack.c.h.b16 %v1218
      %v1283 = vunpack.c.l.b16 %v1219
      %v1284 = vunpack.c.h.b16 %v1219
      %v1285 = vunpack.c.l.b16 %v1220
      %v1286 = vunpack.c.h.b16 %v1220
      %v1287 = vunpack.c.l.b16 %v1221
      %v1288 = vunpack.c.h.b16 %v1221
      %v1289 = vunpack.c.l.b16 %v1222
      %v1290 = vunpack.c.h.b16 %v1222
      %v1291 = vunpack.c.l.b16 %v1223
      %v1292 = vunpack.c.h.b16 %v1223
      %v1293 = vunpack.c.l.b16 %v1224
      %v1294 = vunpack.c.h.b16 %v1224
      %v1295 = vunpack.c.l.b16 %v1225
      %v1296 = vunpack.c.h.b16 %v1225
      %v1297 = vunpack.c.l.b16 %v1226
      %v1298 = vunpack.c.h.b16 %v1226
      %v1299 = vunpack.c.l.b16 %v1227
      %v1300 = vunpack.c.h.b16 %v1227
      %v1301 = vunpack.c.l.b16 %v1228
      %v1302 = vunpack.c.h.b16 %v1228
      %v1303 = vunpack.c.l.b16 %v1229
      %v1304 = vunpack.c.h.b16 %v1229
      %v1305 = vunpack.c.l.b16 %v1230
      %v1306 = vunpack.c.h.b16 %v1230
      %v1307 = vunpack.c.l.b16 %v1231
      %v1308 = vunpack.c.h.b16 %v1231
      %v1309 = vunpack.c.l.b16 %v1232
      %v1310 = vunpack.c.h.b16 %v1232
      %v1311 = vunpack.c.l.b16 %v1233
      %v1312 = vunpack.c.h.b16 %v1233
      %v1313 = vunpack.c.l.b16 %v1234
      %v1314 = vunpack.c.h.b16 %v1234
      %v1315 = vunpack.c.l.b16 %v1235
      %v1316 = vunpack.c.h.b16 %v1235
      %v1317 = vunpack.c.l.b16 %v1236
      %v1318 = vunpack.c.h.b16 %v1236
      %v1319 = vunpack.c.l.b16 %v1237
      %v1320 = vunpack.c.h.b16 %v1237
      %v1321 = vunpack.c.l.b16 %v1238
      %v1322 = vunpack.c.h.b16 %v1238
      %v1323 = vunpack.c.l.b16 %v1239
      %v1324 = vunpack.c.h.b16 %v1239
      %v1325 = vunpack.c.l.b16 %v1240
      %v1326 = vunpack.c.h.b16 %v1240
      %v1327 = vunpack.c.l.b16 %v1241
      %v1328 = vunpack.c.h.b16 %v1241
      %v1329 = vpack.c.b16 %v1277, %v1275
      %v1330 = vpack.c.b16 %v1278, %v1276
      %v1331 = vpack.c.b16 %v1281, %v1279
      %v1332 = vpack.c.b16 %v1282, %v1280
      %v1333 = vpack.c.b16 %v1285, %v1283
      %v1334 = vpack.c.b16 %v1286, %v1284
      %v1335 = vpack.c.b16 %v1289, %v1287
      %v1336 = vpack.c.b16 %v1290, %v1288
      %v1337 = vpack.c.b16 %v1293, %v1291
      %v1338 = vpack.c.b16 %v1294, %v1292
      %v1339 = vpack.c.b16 %v1297, %v1295
      %v1340 = vpack.c.b16 %v1298, %v1296
      %v1341 = vpack.c.b16 %v1301, %v1299
      %v1342 = vpack.c.b16 %v1302, %v1300
      %v1343 = vpack.c.b16 %v1305, %v1303
      %v1344 = vpack.c.b16 %v1306, %v1304
      %v1345 = vpack.c.b16 %v1309, %v1307
      %v1346 = vpack.c.b16 %v1310, %v1308
      %v1347 = vpack.c.b16 %v1313, %v1311
      %v1348 = vpack.c.b16 %v1314, %v1312
      %v1349 = vpack.c.b16 %v1317, %v1315
      %v1350 = vpack.c.b16 %v1318, %v1316
      %v1351 = vpack.c.b16 %v1321, %v1319
      %v1352 = vpack.c.b16 %v1322, %v1320
      %v1353 = vpack.c.b16 %v1325, %v1323
      %v1354 = vpack.c.b16 %v1326, %v1324
      %v1355 = vpack.c.b16 %v1327, %v1327
      %v1356 = vpack.c.b16 %v1328, %v1328
      %vm1383 = vcmask 719872
      %v1385 = vsel %vm1383, %v1246, 0
      %v1388 = vsel %vm659, %v1355, 0
      %v1391 = vsel %vm659, %v1356, 0
      %1393 = vmatprep.subr.bf16.mxu0 %v1344
      %1394 = vmatpush1.bf16.msra.mxu0 %v1343
      %1395 = vmatprep.subr.bf16.mxu0 %v1342
      %1396 = vmatpush1.bf16.msra.mxu0 %v1341
      %1397 = vmatprep.subr.bf16.mxu0 %v1340
      %1398 = vmatpush1.bf16.msra.mxu0 %v1339
      %1399 = vmatprep.subr.bf16.mxu0 %v1338
      %1400 = vmatpush1.bf16.msra.mxu0 %v1337
      %1401 = vmatprep.subr.bf16.mxu0 %v1336
      %1402 = vmatpush1.bf16.msra.mxu0 %v1335
      %1403 = vmatprep.subr.bf16.mxu0 %v1334
      %1404 = vmatpush1.bf16.msra.mxu0 %v1333
      %1405 = vmatprep.subr.bf16.mxu0 %v1332
      %1406 = vmatpush1.bf16.msra.mxu0 %v1331
      %1407 = vmatprep.subr.bf16.mxu0 %v1330
      %1408 = vmatpush1.bf16.msra.mxu0 %v1329
      %1409 = vmatprep.subr.bf16.mxu0 0
      %1410 = vmatpush2.bf16.msra.mxu0 0
      %1411 = vmatprep.subr.bf16.mxu0 0
      %1412 = vmatpush2.bf16.msra.mxu0 0
      %1413 = vmatprep.subr.bf16.mxu0 %v1391
      %1414 = vmatpush2.bf16.msra.mxu0 %v1388
      %1415 = vmatprep.subr.bf16.mxu0 %v1354
      %1416 = vmatpush2.bf16.msra.mxu0 %v1353
      %1417 = vmatprep.subr.bf16.mxu0 %v1352
      %1418 = vmatpush2.bf16.msra.mxu0 %v1351
      %1419 = vmatprep.subr.bf16.mxu0 %v1350
      %1420 = vmatpush2.bf16.msra.mxu0 %v1349
      %1421 = vmatprep.subr.bf16.mxu0 %v1348
      %1422 = vmatpush2.bf16.msra.mxu0 %v1347
      %1423 = vmatprep.subr.bf16.mxu0 %v1346
      %1424 = vmatpush2.bf16.msra.mxu0 %v1345
      %1425 = vmatprep.mubr.bf16.mxu0 %v1385
      %1426 = vmatmul.mubr.bf16.gmra.mxu0 %v1245
      %v1427 = vpop.f32.mrf.mxu0
      %v1428 = vadd.f32 0.0, %v1427
      %v1429 = vpop.f32.mrf.mxu0
      %v1430 = vadd.f32 0.0, %v1429
      %v1431 = vpop.f32.mrf.mxu0
      %v1432 = vpop.f32.mrf.mxu0
      %1433 = vdwg.mxu0
      %v1434 = vmax.f32 %v1428, 0.0
      %v1435 = vmax.f32 %v1430, 0.0
      %v1436 = vadd.f32 %v1434, %v1435
      %1437 = vadd.xlane.f32.xlu0 %v1436
      %v1438 = vpop.xlane.xlu0 %1437
      %v1439 = vrcp.pop 256.0
      %v1440 = vmul.f32 %v1438, %v1439
      %v1441 = vld [vmem:[%s6] sm:$0x3]
      %v1443 = vsel %vm382, %v1441, 0
      %1445 = vmatprep.subr.mxu0 0.0
      %1446 = vmatpush1.msra.mxu0 0.0
      %1447 = vmatprep.subr.mxu0 0.0
      %1448 = vmatpush1.msra.mxu0 0.0
      %1449 = vmatprep.subr.mxu0 0.0
      %1450 = vmatpush1.msra.mxu0 0.0
      %1451 = vmatprep.subr.mxu0 0.0
      %1452 = vmatpush1.msra.mxu0 0.0
      %1453 = vmatprep.subr.mxu0 0.0
      %1454 = vmatpush1.msra.mxu0 0.0
      %1455 = vmatprep.subr.mxu0 0.0
      %1456 = vmatpush1.msra.mxu0 0.0
      %1457 = vmatprep.subr.mxu0 0.0
      %1458 = vmatpush1.msra.mxu0 0.0
      %1459 = vmatprep.subr.mxu0 0.0
      %1460 = vmatpush1.msra.mxu0 0.0
      %1461 = vmatprep.subr.mxu0 0.0
      %1462 = vmatpush1.msra.mxu0 0.0
      %1463 = vmatprep.subr.mxu0 0.0
      %1464 = vmatpush1.msra.mxu0 0.0
      %1465 = vmatprep.subr.mxu0 0.0
      %1466 = vmatpush1.msra.mxu0 0.0
      %1467 = vmatprep.subr.mxu0 0.0
      %1468 = vmatpush1.msra.mxu0 0.0
      %1469 = vmatprep.subr.mxu0 0.0
      %1470 = vmatpush1.msra.mxu0 0.0
      %1471 = vmatprep.subr.mxu0 0.0
      %1472 = vmatpush1.msra.mxu0 0.0
      %1473 = vmatprep.subr.mxu0 0.0
      %1474 = vmatpush1.msra.mxu0 0.0
      %1475 = vmatprep.subr.mxu0 0.0
      %1476 = vmatpush1.msra.mxu0 %v1440
      %1477 = vmatprep.subr.mxu0 0.0
      %1478 = vmatpush2.msra.mxu0 0.0
      %1479 = vmatprep.subr.mxu0 0.0
      %1480 = vmatpush2.msra.mxu0 0.0
      %1481 = vmatprep.subr.mxu0 0.0
      %1482 = vmatpush2.msra.mxu0 0.0
      %1483 = vmatprep.subr.mxu0 0.0
      %1484 = vmatpush2.msra.mxu0 0.0
      %1485 = vmatprep.subr.mxu0 0.0
      %1486 = vmatpush2.msra.mxu0 0.0
      %1487 = vmatprep.subr.mxu0 0.0
      %1488 = vmatpush2.msra.mxu0 0.0
      %1489 = vmatprep.subr.mxu0 0.0
      %1490 = vmatpush2.msra.mxu0 0.0
      %1491 = vmatprep.subr.mxu0 0.0
      %1492 = vmatpush2.msra.mxu0 0.0
      %1493 = vmatprep.subr.mxu0 0.0
      %1494 = vmatpush2.msra.mxu0 0.0
      %1495 = vmatprep.subr.mxu0 0.0
      %1496 = vmatpush2.msra.mxu0 0.0
      %1497 = vmatprep.subr.mxu0 0.0
      %1498 = vmatpush2.msra.mxu0 0.0
      %1499 = vmatprep.subr.mxu0 0.0
      %1500 = vmatpush2.msra.mxu0 0.0
      %1501 = vmatprep.subr.mxu0 0.0
      %1502 = vmatpush2.msra.mxu0 0.0
      %1503 = vmatprep.subr.mxu0 0.0
      %1504 = vmatpush2.msra.mxu0 0.0
      %1505 = vmatprep.subr.mxu0 0.0
      %1506 = vmatpush2.msra.mxu0 0.0
      %1507 = vmatprep.subr.mxu0 0.0
      %1508 = vmatpush2.msra.mxu0 0.0
      %1509 = vmatprep.mubr.f32.mxu0 0.0
      %1510 = vmatmul.mubr.f32.gmra.mxu0 %v1443
      %v1511 = vpop.f32.mrf.mxu0
      %v1512 = vadd.f32 0.0, %v1511
      %v1513 = vpop.f32.mrf.mxu0
      %1514 = vdwg.mxu0
      %v1515 = vmax.f32 %v1512, 0.0
      %v1516 = vld [vmem:[%s7] sm:$0xff]
      %vm1517 = vcmask 15360
      %v1519 = vsel %vm1517, %v1516, 0
      %vm1521 = vcmask 1041408
      %v1523 = vsel %vm1521, %v1515, 0
      %1525 = vmatprep.subr.mxu0 0.0
      %1526 = vmatpush1.msra.mxu0 0.0
      %1527 = vmatprep.subr.mxu0 0.0
      %1528 = vmatpush1.msra.mxu0 0.0
      %1529 = vmatprep.subr.mxu0 0.0
      %1530 = vmatpush1.msra.mxu0 0.0
      %1531 = vmatprep.subr.mxu0 0.0
      %1532 = vmatpush1.msra.mxu0 0.0
      %1533 = vmatprep.subr.mxu0 0.0
      %1534 = vmatpush1.msra.mxu0 0.0
      %1535 = vmatprep.subr.mxu0 0.0
      %1536 = vmatpush1.msra.mxu0 0.0
      %1537 = vmatprep.subr.mxu0 0.0
      %1538 = vmatpush1.msra.mxu0 0.0
      %1539 = vmatprep.subr.mxu0 0.0
      %1540 = vmatpush1.msra.mxu0 0.0
      %1541 = vmatprep.subr.mxu0 0.0
      %1542 = vmatpush1.msra.mxu0 0.0
      %1543 = vmatprep.subr.mxu0 0.0
      %1544 = vmatpush1.msra.mxu0 0.0
      %1545 = vmatprep.subr.mxu0 0.0
      %1546 = vmatpush1.msra.mxu0 0.0
      %1547 = vmatprep.subr.mxu0 0.0
      %1548 = vmatpush1.msra.mxu0 0.0
      %1549 = vmatprep.subr.mxu0 0.0
      %1550 = vmatpush1.msra.mxu0 0.0
      %1551 = vmatprep.subr.mxu0 0.0
      %1552 = vmatpush1.msra.mxu0 0.0
      %1553 = vmatprep.subr.mxu0 0.0
      %1554 = vmatpush1.msra.mxu0 0.0
      %1555 = vmatprep.subr.mxu0 0.0
      %1556 = vmatpush1.msra.mxu0 %v1523
      %1557 = vmatprep.subr.mxu0 0.0
      %1558 = vmatpush2.msra.mxu0 0.0
      %1559 = vmatprep.subr.mxu0 0.0
      %1560 = vmatpush2.msra.mxu0 0.0
      %1561 = vmatprep.subr.mxu0 0.0
      %1562 = vmatpush2.msra.mxu0 0.0
      %1563 = vmatprep.subr.mxu0 0.0
      %1564 = vmatpush2.msra.mxu0 0.0
      %1565 = vmatprep.subr.mxu0 0.0
      %1566 = vmatpush2.msra.mxu0 0.0
      %1567 = vmatprep.subr.mxu0 0.0
      %1568 = vmatpush2.msra.mxu0 0.0
      %1569 = vmatprep.subr.mxu0 0.0
      %1570 = vmatpush2.msra.mxu0 0.0
      %1571 = vmatprep.subr.mxu0 0.0
      %1572 = vmatpush2.msra.mxu0 0.0
      %1573 = vmatprep.subr.mxu0 0.0
      %1574 = vmatpush2.msra.mxu0 0.0
      %1575 = vmatprep.subr.mxu0 0.0
      %1576 = vmatpush2.msra.mxu0 0.0
      %1577 = vmatprep.subr.mxu0 0.0
      %1578 = vmatpush2.msra.mxu0 0.0
      %1579 = vmatprep.subr.mxu0 0.0
      %1580 = vmatpush2.msra.mxu0 0.0
      %1581 = vmatprep.subr.mxu0 0.0
      %1582 = vmatpush2.msra.mxu0 0.0
      %1583 = vmatprep.subr.mxu0 0.0
      %1584 = vmatpush2.msra.mxu0 0.0
      %1585 = vmatprep.subr.mxu0 0.0
      %1586 = vmatpush2.msra.mxu0 0.0
      %1587 = vmatprep.subr.mxu0 0.0
      %1588 = vmatpush2.msra.mxu0 0.0
      %1589 = vmatprep.mubr.f32.mxu0 0.0
      %1590 = vmatmul.mubr.f32.gmra.mxu0 %v1519
      %v1591 = vpop.f32.mrf.mxu0
      %v1592 = vadd.f32 0.0, %v1591
      %v1593 = vpop.f32.mrf.mxu0
      %1594 = vdwg.mxu0
      %v1595 = vxor.u32 %v1592, 2147483648
      %v1596 = vmul.f32 %v1595, 1.442695
      %v1597 = vpow.pop %v1596
      %v1598 = vadd.f32 %v1597, 1.0
      %v1599 = vrcp.pop %v1598
      %v1600 = vmul.f32 1.0, %v1599
      %1602 = vset.pattern.permute.xlu0 0
      %1603 = vperm.xlu0 %1602, %v1600
      %v1604 = vpop.permute.xlu0 %1603
      %v1606 = vmul.f32 %v1604, %v1434
      %v1607 = vmul.f32 %v1604, %v1435
      %1608 = vst [vmem:[%s345] sm:$0xff] %v1606
      %1609 = vst [vmem:[%s345 + $0x8] sm:$0xff] %v1607
      %p1610 = scmp.lt.s32.totalorder %s19, 1
      %s1611 = scalar_select %p1610, %s19, 1
      %s1612 = smul.addr %s1611, 2
      %s1613 = smul.addr %s1612, 8
      %s1614 = scalar_lea.vmem %s8, %s1613
      // Predicated region
      $region53: #{famca_forward.1} parent=51 // pred_check
        %p1615 = pneg %p220
      $region54: #{famca_forward.1} parent=51 // pred_check_branch
        %1617 = sbr.rel (%p1615) target = $region56
      $region55: #{famca_forward.1} parent=51 // pred_region
        _
      $region56: #{famca_forward.1} parent=51 // pred_fallthru
        _
    $region52: #{famca_forward.1} parent=5 // pred_fallthru
      _
    %p1618 = scmp.le.s32.totalorder 2, %s14
    // Predicated region
    $region57: #{famca_forward.1} parent=5 // pred_check
      %p1619 = pneg %p1618
    $region58: #{famca_forward.1} parent=5 // pred_check_branch
      %1621 = sbr.rel (%p1619) target = $region60
    $region59: #{famca_forward.1} parent=5 // pred_region
      %s1622 = ssub.s32 %s14, 2
      // Predicated region
      $region61: #{famca_forward.1} parent=59 // pred_check
        %p1623 = pneg %p226
      $region62: #{famca_forward.1} parent=59 // pred_check_branch
        %1625 = sbr.rel (%p1623) target = $region64
      $region63: #{famca_forward.1} parent=59 // pred_region
        %p1626 = scmp.lt.s32.totalorder %s20, 1
        %s1627 = scalar_select %p1626, %s20, 1
        %s1628 = smul.addr %s1627, 2
        %s1629 = smul.addr %s1628, 8
        %s1630 = scalar_lea.vmem %s8, %s1629
      $region64: #{famca_forward.1} parent=59 // pred_fallthru
        _
    $region60: #{famca_forward.1} parent=5 // pred_fallthru
      _
  $region6: #{famca_forward.1} parent=0 // loop_footer
    %s18 = sadd.s32 1, %s14
  $region7: #{famca_forward.1} parent=0 // loop_footer_branch
    %13 = sbr.rel target = $region3
  $region8: #{famca_forward.1} parent=0 // loop_exit
    _

</llo_original>
